<compile_context>
chip_gen: v5e
topology: v5e:2x2
jax: 0.10.0
libtpu: 0.0.40
codegen_flags: <defaults>
</compile_context>

<pallas_src>
import jax
import jax.numpy as jnp
from jax.experimental import pallas as pl
from jax.experimental.pallas import tpu as pltpu


def _round_up(x, m):
    return (x + m - 1) // m * m


def _mlp_kernel(x_ref, w1_ref, b1_ref, w2_ref, b2_ref,
                w3_ref, b3_ref, w4_ref, b4_ref, o_ref, acc_ref):
    """One (batch-tile, K-tile) grid step.

    x:  (TB, TK) native dtype     w1: (TK, L1)  bf16
    b1: (1, L1)  f32              w2: (L1, L2)  bf16
    b2: (1, L2)  f32              w3: (L2, L3p) bf16
    b3: (1, L3p) f32              w4: (1, L3p)  f32 (row form of the (L3,1) weight)
    b4: (1, 1)   f32
    o:  (TB, 1)  f32              acc: (TB, L1) f32 scratch
    """
    k = pl.program_id(1)

    @pl.when(k == 0)
    def _():
        acc_ref[...] = jnp.zeros_like(acc_ref)

    # Layer-1 partial product for this K slice (f32 accumulation on the MXU).
    acc_ref[...] += jnp.dot(x_ref[...].astype(jnp.bfloat16), w1_ref[...],
                            preferred_element_type=jnp.float32)

    @pl.when(k == pl.num_programs(1) - 1)
    def _():
        h1 = jnp.maximum(acc_ref[...] + b1_ref[...], 0.0)

        h2 = jnp.dot(h1.astype(jnp.bfloat16), w2_ref[...],
                     preferred_element_type=jnp.float32) + b2_ref[...]
        h2 = jnp.maximum(h2, 0.0)

        h3 = jnp.dot(h2.astype(jnp.bfloat16), w3_ref[...],
                     preferred_element_type=jnp.float32) + b3_ref[...]
        h3 = jnp.maximum(h3, 0.0)

        # Final Linear(L3, 1): VPU multiply + lane reduction instead of a
        # 1-lane MXU matmul (padded L3 lanes carry zero weights -> no effect).
        z = jnp.sum(h3 * w4_ref[...], axis=-1, keepdims=True) + b4_ref[...]
        o_ref[...] = pl.reciprocal(1.0 + jnp.exp(-z), approx=True)


def dnn_classifier_forward(x, packed, *, tb_max=512, tk_max=2048):
    """x: (B, ...) any shape; flattened to (B, input_size) like nn.Flatten."""
    B = x.shape[0]
    x2d = x.reshape(B, -1)  # keep native dtype (no wrapper upcast)
    D = x2d.shape[1]

    w1, b1 = packed["w1"], packed["b1"]
    w2, b2 = packed["w2"], packed["b2"]
    w3, b3 = packed["w3"], packed["b3"]
    w4, b4 = packed["w4"], packed["b4"]
    L1, L2, L3p = w1.shape[1], w2.shape[1], w3.shape[1]

    # --- batch tiling -----------------------------------------------------
    Bp = _round_up(B, 8)
    TB = Bp if Bp <= tb_max else tb_max
    Bp = _round_up(Bp, TB)
    if Bp != B:
        x2d = jnp.pad(x2d, ((0, Bp - B), (0, 0)))

    # --- K tiling of the flattened input dim (layer-1 reduction) -----------
    if D <= tk_max:
        TK, Dp = D, D
    else:
        TK = tk_max
        Dp = _round_up(D, TK)
        x2d = jnp.pad(x2d, ((0, 0), (0, Dp - D)))
        w1 = jnp.pad(w1, ((0, Dp - D), (0, 0)))
    nb, nk = Bp // TB, Dp // TK

    out = pl.pallas_call(
        _mlp_kernel,
        out_shape=jax.ShapeDtypeStruct((Bp, 1), jnp.float32),
        grid=(nb, nk),
        in_specs=[
            pl.BlockSpec((TB, TK), lambda i, k: (i, k)),    # x tile
            pl.BlockSpec((TK, L1), lambda i, k: (k, 0)),    # w1 K-slice
            pl.BlockSpec((1, L1), lambda i, k: (0, 0)),     # b1 (resident)
            pl.BlockSpec((L1, L2), lambda i, k: (0, 0)),    # w2 (resident)
            pl.BlockSpec((1, L2), lambda i, k: (0, 0)),     # b2
            pl.BlockSpec((L2, L3p), lambda i, k: (0, 0)),   # w3 (resident)
            pl.BlockSpec((1, L3p), lambda i, k: (0, 0)),    # b3
            pl.BlockSpec((1, L3p), lambda i, k: (0, 0)),    # w4 row
            pl.BlockSpec((1, 1), lambda i, k: (0, 0)),      # b4
        ],
        out_specs=pl.BlockSpec((TB, 1), lambda i, k: (i, 0)),
        scratch_shapes=[pltpu.VMEM((TB, L1), jnp.float32)],
        compiler_params=pltpu.CompilerParams(
            dimension_semantics=("parallel", "arbitrary"),
            vmem_limit_bytes=48 * 1024 * 1024,
        ),
    )(x2d, w1, b1, w2, b2, w3, b3, w4, b4)
    return out[:B]


def init_params(key, input_size, l1=512, l2=128, l3=64):
    """Torch-like init: uniform(-1/sqrt(fan_in), 1/sqrt(fan_in)), W as (in, out)."""
    dims = [(input_size, l1), (l1, l2), (l2, l3), (l3, 1)]
    params = []
    for fan_in, fan_out in dims:
        key, kw, kb = jax.random.split(key, 3)
        bound = 1.0 / jnp.sqrt(jnp.float32(fan_in))
        w = jax.random.uniform(kw, (fan_in, fan_out), jnp.float32, -bound, bound)
        b = jax.random.uniform(kb, (1, fan_out), jnp.float32, -bound, bound)
        params.append((w, b))
    return params


def prepare_params(params):
    """Pack params for the kernel: bf16 matmul weights, L3 padded to 128,
    last layer weight as an f32 row for the VPU multiply-reduce tail."""
    (w1, b1), (w2, b2), (w3, b3), (w4, b4) = params
    L3 = w3.shape[1]
    L3p = _round_up(L3, 128)
    pad3 = L3p - L3
    w3p = jnp.pad(w3, ((0, 0), (0, pad3)))
    b3p = jnp.pad(b3, ((0, 0), (0, pad3)))
    w4_row = jnp.pad(w4.reshape(1, L3), ((0, 0), (0, pad3)))
    return dict(
        w1=w1.astype(jnp.bfloat16), b1=b1.astype(jnp.float32),
        w2=w2.astype(jnp.bfloat16), b2=b2.astype(jnp.float32),
        w3=w3p.astype(jnp.bfloat16), b3=b3p.astype(jnp.float32),
        w4=w4_row.astype(jnp.float32), b4=b4.astype(jnp.float32),
    )


def reference_forward(x, params):
    """Pure-JAX reference mirroring the kernel's bf16-matmul / f32-accumulate math."""
    B = x.shape[0]
    h = x.reshape(B, -1)
    (w1, b1), (w2, b2), (w3, b3), (w4, b4) = params
    h = jnp.maximum(jnp.dot(h.astype(jnp.bfloat16), w1.astype(jnp.bfloat16),
                            preferred_element_type=jnp.float32) + b1, 0.0)
    h = jnp.maximum(jnp.dot(h.astype(jnp.bfloat16), w2.astype(jnp.bfloat16),
                            preferred_element_type=jnp.float32) + b2, 0.0)
    h = jnp.maximum(jnp.dot(h.astype(jnp.bfloat16), w3.astype(jnp.bfloat16),
                            preferred_element_type=jnp.float32) + b3, 0.0)
    z = h @ w4 + b4
    return jax.nn.sigmoid(z)


if __name__ == "__main__":
    key = jax.random.PRNGKey(0)
    k_x, k_p = jax.random.split(key)

    # Small example input: batch=2, channels=4, spatial 16x16 -> input_size=1024.
    x = jax.random.normal(k_x, (2, 4, 16, 16), jnp.float32)
    input_size = 4 * 16 * 16

    params = init_params(k_p, input_size, l1=512, l2=128, l3=64)
    packed = prepare_params(params)

    out = dnn_classifier_forward(x, packed)
    out = jax.block_until_ready(out)

    ref = reference_forward(x, params)
    assert out.shape == (2, 1)
    assert jnp.allclose(out, ref, atol=5e-3, rtol=0.0), float(jnp.max(jnp.abs(out - ref)))

    print("KERNEL_OK")
</pallas_src>

<mosaic_0001>
module attributes {stable_mosaic.version = 11 : i64} {
  func.func @_mlp_kernel(%arg0: i32, %arg1: i32, %arg2: memref<8x1024xf32, #tpu.memory_space<vmem>>, %arg3: memref<1024x512xbf16, #tpu.memory_space<vmem>>, %arg4: memref<1x512xf32, #tpu.memory_space<vmem>>, %arg5: memref<512x128xbf16, #tpu.memory_space<vmem>>, %arg6: memref<1x128xf32, #tpu.memory_space<vmem>>, %arg7: memref<128x128xbf16, #tpu.memory_space<vmem>>, %arg8: memref<1x128xf32, #tpu.memory_space<vmem>>, %arg9: memref<1x128xf32, #tpu.memory_space<vmem>>, %arg10: memref<1x1xf32, #tpu.memory_space<vmem>>, %arg11: memref<8x1xf32, #tpu.memory_space<vmem>>, %arg12: memref<8x512xf32, #tpu.memory_space<vmem>>) attributes {dimension_semantics = [#tpu.dimension_semantics<parallel>, #tpu.dimension_semantics<arbitrary>], iteration_bounds = array<i64: 1, 1>, scalar_prefetch = 0 : i64, scratch_operands = 1 : i64, tpu.core_type = #tpu.core_type<tc>, window_params = [{transform_indices = @transform_0, window_bounds = array<i64: 8, 1024>}, {transform_indices = @transform_1, window_bounds = array<i64: 1024, 512>}, {pipeline_mode = #tpu.pipeline_mode<synchronous>, transform_indices = @transform_2, window_bounds = array<i64: 1, 512>}, {pipeline_mode = #tpu.pipeline_mode<synchronous>, transform_indices = @transform_3, window_bounds = array<i64: 512, 128>}, {pipeline_mode = #tpu.pipeline_mode<synchronous>, transform_indices = @transform_4, window_bounds = array<i64: 1, 128>}, {pipeline_mode = #tpu.pipeline_mode<synchronous>, transform_indices = @transform_5, window_bounds = array<i64: 128, 128>}, {pipeline_mode = #tpu.pipeline_mode<synchronous>, transform_indices = @transform_6, window_bounds = array<i64: 1, 128>}, {pipeline_mode = #tpu.pipeline_mode<synchronous>, transform_indices = @transform_7, window_bounds = array<i64: 1, 128>}, {pipeline_mode = #tpu.pipeline_mode<synchronous>, transform_indices = @transform_8, window_bounds = array<i64: 1, 1>}, {transform_indices = @transform_9, window_bounds = array<i64: 8, 1>}]} {
    %c0_i32 = arith.constant 0 : i32
    %0 = arith.cmpi eq, %arg1, %c0_i32 : i32
    %1 = arith.extui %0 : i1 to i32
    %c0_i32_0 = arith.constant 0 : i32
    %2 = arith.cmpi ne, %1, %c0_i32_0 : i32
    scf.if %2 {
      %cst_10 = arith.constant 0.000000e+00 : f32
      %13 = vector.broadcast %cst_10 : f32 to vector<8x512xf32>
      %c0_11 = arith.constant 0 : index
      %c0_12 = arith.constant 0 : index
      %14 = vector.load %arg12[%c0_11, %c0_12] : memref<8x512xf32, #tpu.memory_space<vmem>>, vector<8x512xf32>
      tpu.vector_store %arg12[%c0_11, %c0_12], %13 {strides = array<i32>} : memref<8x512xf32, #tpu.memory_space<vmem>>, vector<8x512xf32>,
    } else {
    }
    %c0 = arith.constant 0 : index
    %c0_1 = arith.constant 0 : index
    %3 = vector.load %arg12[%c0, %c0_1] : memref<8x512xf32, #tpu.memory_space<vmem>>, vector<8x512xf32>
    %c0_2 = arith.constant 0 : index
    %c0_3 = arith.constant 0 : index
    %4 = vector.load %arg2[%c0_2, %c0_3] : memref<8x1024xf32, #tpu.memory_space<vmem>>, vector<8x1024xf32>
    %5 = arith.truncf %4 : vector<8x1024xf32> to vector<8x1024xbf16>
    %c0_4 = arith.constant 0 : index
    %c0_5 = arith.constant 0 : index
    %6 = vector.load %arg3[%c0_4, %c0_5] : memref<1024x512xbf16, #tpu.memory_space<vmem>>, vector<1024x512xbf16>
    %cst = arith.constant dense<0.000000e+00> : vector<8x512xf32>
    %7 = tpu.matmul %5, %6, %cst {dimension_numbers = #tpu.dot_dimension_numbers<[1], [0], [0], [1], [0, 0, 1, 1], [], []>} : vector<8x1024xbf16>, vector<1024x512xbf16>, vector<8x512xf32> -> vector<8x512xf32>
    %8 = arith.addf %3, %7 : vector<8x512xf32>
    %c0_6 = arith.constant 0 : index
    %c0_7 = arith.constant 0 : index
    %9 = vector.load %arg12[%c0_6, %c0_7] : memref<8x512xf32, #tpu.memory_space<vmem>>, vector<8x512xf32>
    tpu.vector_store %arg12[%c0_6, %c0_7], %8 {strides = array<i32>} : memref<8x512xf32, #tpu.memory_space<vmem>>, vector<8x512xf32>,
    %c0_i32_8 = arith.constant 0 : i32
    %10 = arith.cmpi eq, %arg1, %c0_i32_8 : i32
    %11 = arith.extui %10 : i1 to i32
    %c0_i32_9 = arith.constant 0 : i32
    %12 = arith.cmpi ne, %11, %c0_i32_9 : i32
    scf.if %12 {
      %c0_10 = arith.constant 0 : index
      %c0_11 = arith.constant 0 : index
      %13 = vector.load %arg12[%c0_10, %c0_11] : memref<8x512xf32, #tpu.memory_space<vmem>>, vector<8x512xf32>
      %c0_12 = arith.constant 0 : index
      %c0_13 = arith.constant 0 : index
      %14 = vector.load %arg4[%c0_12, %c0_13] : memref<1x512xf32, #tpu.memory_space<vmem>>, vector<1x512xf32>
      %15 = vector.broadcast %14 : vector<1x512xf32> to vector<8x512xf32>
      %16 = arith.addf %13, %15 : vector<8x512xf32>
      %cst_14 = arith.constant 0.000000e+00 : f32
      %17 = vector.broadcast %cst_14 : f32 to vector<8x512xf32>
      %18 = arith.maximumf %16, %17 : vector<8x512xf32>
      %19 = arith.truncf %18 : vector<8x512xf32> to vector<8x512xbf16>
      %c0_15 = arith.constant 0 : index
      %c0_16 = arith.constant 0 : index
      %20 = vector.load %arg5[%c0_15, %c0_16] : memref<512x128xbf16, #tpu.memory_space<vmem>>, vector<512x128xbf16>
      %cst_17 = arith.constant dense<0.000000e+00> : vector<8x128xf32>
      %21 = tpu.matmul %19, %20, %cst_17 {dimension_numbers = #tpu.dot_dimension_numbers<[1], [0], [0], [1], [0, 0, 1, 1], [], []>} : vector<8x512xbf16>, vector<512x128xbf16>, vector<8x128xf32> -> vector<8x128xf32>
      %c0_18 = arith.constant 0 : index
      %c0_19 = arith.constant 0 : index
      %22 = vector.load %arg6[%c0_18, %c0_19] : memref<1x128xf32, #tpu.memory_space<vmem>>, vector<1x128xf32>
      %23 = vector.broadcast %22 : vector<1x128xf32> to vector<8x128xf32>
      %24 = arith.addf %21, %23 : vector<8x128xf32>
      %cst_20 = arith.constant 0.000000e+00 : f32
      %25 = vector.broadcast %cst_20 : f32 to vector<8x128xf32>
      %26 = arith.maximumf %24, %25 : vector<8x128xf32>
      %27 = arith.truncf %26 : vector<8x128xf32> to vector<8x128xbf16>
      %c0_21 = arith.constant 0 : index
      %c0_22 = arith.constant 0 : index
      %28 = vector.load %arg7[%c0_21, %c0_22] : memref<128x128xbf16, #tpu.memory_space<vmem>>, vector<128x128xbf16>
      %cst_23 = arith.constant dense<0.000000e+00> : vector<8x128xf32>
      %29 = tpu.matmul %27, %28, %cst_23 {dimension_numbers = #tpu.dot_dimension_numbers<[1], [0], [0], [1], [0, 0, 1, 1], [], []>} : vector<8x128xbf16>, vector<128x128xbf16>, vector<8x128xf32> -> vector<8x128xf32>
      %c0_24 = arith.constant 0 : index
      %c0_25 = arith.constant 0 : index
      %30 = vector.load %arg8[%c0_24, %c0_25] : memref<1x128xf32, #tpu.memory_space<vmem>>, vector<1x128xf32>
      %31 = vector.broadcast %30 : vector<1x128xf32> to vector<8x128xf32>
      %32 = arith.addf %29, %31 : vector<8x128xf32>
      %cst_26 = arith.constant 0.000000e+00 : f32
      %33 = vector.broadcast %cst_26 : f32 to vector<8x128xf32>
      %34 = arith.maximumf %32, %33 : vector<8x128xf32>
      %c0_27 = arith.constant 0 : index
      %c0_28 = arith.constant 0 : index
      %35 = vector.load %arg9[%c0_27, %c0_28] : memref<1x128xf32, #tpu.memory_space<vmem>>, vector<1x128xf32>
      %36 = vector.broadcast %35 : vector<1x128xf32> to vector<8x128xf32>
      %37 = arith.mulf %34, %36 : vector<8x128xf32>
      %cst_29 = arith.constant dense<0.000000e+00> : vector<8xf32>
      %38 = vector.multi_reduction <add>, %37, %cst_29 [1] : vector<8x128xf32> to vector<8xf32>
      %39 = vector.shape_cast %38 : vector<8xf32> to vector<8x1xf32>
      %c0_30 = arith.constant 0 : index
      %c0_31 = arith.constant 0 : index
      %40 = vector.load %arg10[%c0_30, %c0_31] : memref<1x1xf32, #tpu.memory_space<vmem>>, vector<1x1xf32>
      %41 = vector.broadcast %40 : vector<1x1xf32> to vector<8x1xf32>
      %42 = arith.addf %39, %41 : vector<8x1xf32>
      %cst_32 = arith.constant 0.000000e+00 : f32
      %43 = vector.broadcast %cst_32 : f32 to vector<8x1xf32>
      %44 = arith.subf %43, %42 : vector<8x1xf32>
      %45 = math.exp %44 : vector<8x1xf32>
      %cst_33 = arith.constant 1.000000e+00 : f32
      %46 = vector.broadcast %cst_33 : f32 to vector<8x1xf32>
      %47 = arith.addf %46, %45 : vector<8x1xf32>
      %48 = tpu.reciprocal %47 {approx = true} : vector<8x1xf32> -> vector<8x1xf32>
      %c0_34 = arith.constant 0 : index
      %c0_35 = arith.constant 0 : index
      %49 = vector.load %arg11[%c0_34, %c0_35] : memref<8x1xf32, #tpu.memory_space<vmem>>, vector<8x1xf32>
      tpu.vector_store %arg11[%c0_34, %c0_35], %48 {strides = array<i32>} : memref<8x1xf32, #tpu.memory_space<vmem>>, vector<8x1xf32>,
    } else {
    }
    return
  }
  func.func @transform_0(%arg0: i32, %arg1: i32) -> (i32, i32) {
    %c0_i32 = arith.constant 0 : i32
    return %arg0, %arg1 : i32, i32
  }
  func.func @transform_1(%arg0: i32, %arg1: i32) -> (i32, i32) {
    %c0_i32 = arith.constant 0 : i32
    %c0_i32_0 = arith.constant 0 : i32
    return %arg1, %c0_i32 : i32, i32
  }
  func.func @transform_2(%arg0: i32, %arg1: i32) -> (i32, i32) {
    %c0_i32 = arith.constant 0 : i32
    %c0_i32_0 = arith.constant 0 : i32
    %c0_i32_1 = arith.constant 0 : i32
    return %c0_i32, %c0_i32_0 : i32, i32
  }
  func.func @transform_3(%arg0: i32, %arg1: i32) -> (i32, i32) {
    %c0_i32 = arith.constant 0 : i32
    %c0_i32_0 = arith.constant 0 : i32
    %c0_i32_1 = arith.constant 0 : i32
    return %c0_i32, %c0_i32_0 : i32, i32
  }
  func.func @transform_4(%arg0: i32, %arg1: i32) -> (i32, i32) {
    %c0_i32 = arith.constant 0 : i32
    %c0_i32_0 = arith.constant 0 : i32
    %c0_i32_1 = arith.constant 0 : i32
    return %c0_i32, %c0_i32_0 : i32, i32
  }
  func.func @transform_5(%arg0: i32, %arg1: i32) -> (i32, i32) {
    %c0_i32 = arith.constant 0 : i32
    %c0_i32_0 = arith.constant 0 : i32
    %c0_i32_1 = arith.constant 0 : i32
    return %c0_i32, %c0_i32_0 : i32, i32
  }
  func.func @transform_6(%arg0: i32, %arg1: i32) -> (i32, i32) {
    %c0_i32 = arith.constant 0 : i32
    %c0_i32_0 = arith.constant 0 : i32
    %c0_i32_1 = arith.constant 0 : i32
    return %c0_i32, %c0_i32_0 : i32, i32
  }
  func.func @transform_7(%arg0: i32, %arg1: i32) -> (i32, i32) {
    %c0_i32 = arith.constant 0 : i32
    %c0_i32_0 = arith.constant 0 : i32
    %c0_i32_1 = arith.constant 0 : i32
    return %c0_i32, %c0_i32_0 : i32, i32
  }
  func.func @transform_8(%arg0: i32, %arg1: i32) -> (i32, i32) {
    %c0_i32 = arith.constant 0 : i32
    %c0_i32_0 = arith.constant 0 : i32
    %c0_i32_1 = arith.constant 0 : i32
    return %c0_i32, %c0_i32_0 : i32, i32
  }
  func.func @transform_9(%arg0: i32, %arg1: i32) -> (i32, i32) {
    %c0_i32 = arith.constant 0 : i32
    %c0_i32_0 = arith.constant 0 : i32
    return %arg0, %c0_i32 : i32, i32
  }
}

</mosaic_0001>

<llo_original>
// kernel: tpu_custom_call.1
$region0: #{tpu_custom_call.1}
  #allocation0 [shape = 'u32[]', space=smem, size = 0x4, offset = 0x4, fixed_abs, tag = 'smem constant byte address 0x4 - core index']
  #allocation1 [shape = 'u32[72,128]{1,0:T(1,128)}', space=vmem, size = 0x9000, scoped, tag = 'internal scratch']
  #allocation2 [shape = 'f32[8,512]{1,0:T(8,128)}', space=vmem, size = 0x4000, scoped, tag = 'scratch operand']
  #allocation3 [shape = 'f32[1,1]{1,0:T(1,128)S(1)}', space=vmem, size = 0x200, scoped, tag = 'scoped memory for tpu_custom_call.1']
  %s0 = inlined_call_operand.hbm [shape: f32[8,1024], index: 0, kind: input, shape index: {}]
  %s1 = inlined_call_operand.hbm [shape: bf16[1024,512], index: 1, kind: input, shape index: {}]
  %s2 = inlined_call_operand.hbm [shape: f32[1,512], index: 2, kind: input, shape index: {}]
  %s3 = inlined_call_operand.hbm [shape: bf16[512,128], index: 3, kind: input, shape index: {}]
  %s4 = inlined_call_operand.vmem [shape: f32[1,128], index: 4, kind: input, shape index: {}]
  %s5 = inlined_call_operand.hbm [shape: bf16[128,128], index: 5, kind: input, shape index: {}]
  %s6 = inlined_call_operand.vmem [shape: f32[1,128], index: 6, kind: input, shape index: {}]
  %s7 = inlined_call_operand.vmem [shape: f32[1,128], index: 7, kind: input, shape index: {}]
  %s8 = inlined_call_operand.<no memory space> [shape: f32[1,1], index: 8, kind: input, shape index: {}]
  %s9 = inlined_call_operand.vmem [shape: f32[8,1], index: 9, kind: output, shape index: {}]
  %s10 = sld [smem:[#allocation0]]
  $region74: #{tpu_custom_call.1} parent=0
    _
  %s12 = ssub.s32 1, %s10
  %s13 = scalar_select 0, %s12, %s10
  %v14 = vstv %s8
  %15 = vst [vmem:[#allocation3] sm:$0x1] %v14
  $region1: #{tpu_custom_call.1} parent=0
    #allocation4 [shape = 'u8[32768]{0}', space=vmem, size = 0x8000, scoped, tag = 'input window, operand 0, single buffered']
    #allocation5 [shape = 's32[1]{0}', space=sflag, size = 0x4, scoped, tag = 'scoped memory for tpu_custom_call.1']
    #allocation6 [shape = 'u8[1048576]{0}', space=vmem, size = 0x100000, scoped, tag = 'input window, operand 1, single buffered']
    #allocation7 [shape = 's32[1]{0}', space=sflag, size = 0x4, scoped, tag = 'scoped memory for tpu_custom_call.1']
    #allocation8 [shape = 'u8[2048]{0}', space=vmem, size = 0x800, scoped, tag = 'input window, operand 2, single buffered']
    #allocation9 [shape = 'u8[131072]{0}', space=vmem, size = 0x20000, scoped, tag = 'input window, operand 3, single buffered']
    #allocation10 [shape = 's32[1]{0}', space=sflag, size = 0x4, scoped, tag = 'scoped memory for tpu_custom_call.1']
    #allocation11 [shape = 'u8[32768]{0}', space=vmem, size = 0x8000, scoped, tag = 'input window, operand 5, single buffered']
    %16 = vsyncpa [#allocation5], 0
    %17 = vsyncpa [#allocation7], 0
    %18 = vsyncpa [#allocation10], 0
    // Predicated region
    $region2: #{tpu_custom_call.1} parent=1 // pred_check
      _
    $region3: #{tpu_custom_call.1} parent=1 // pred_check_branch
      %20 = sbr.rel (0) target = $region5
    $region4: #{tpu_custom_call.1} parent=1 // pred_region
      %22 = vsyncadd [#allocation5], 0
      %s24 = sshll.u32 %s0, 4
      %s25 = int_to_ptr.hbm [resolvable:$true] %s24
      %s26 = sshll.u32 [#allocation4], 4
      %s27 = int_to_ptr.vmem [resolvable:$true] %s26
      %29 = dma.hbm_to_vmem [thread:$0]  %s25, 1024, %s27, [#allocation5]
    $region5: #{tpu_custom_call.1} parent=1 // pred_fallthru
      _
    // Predicated region
    $region6: #{tpu_custom_call.1} parent=1 // pred_check
      _
    $region7: #{tpu_custom_call.1} parent=1 // pred_check_branch
      %31 = sbr.rel (0) target = $region9
    $region8: #{tpu_custom_call.1} parent=1 // pred_region
      %33 = vsyncadd [#allocation7], 0
      %s34 = sshll.u32 %s1, 4
      %s35 = int_to_ptr.hbm [resolvable:$true] %s34
      %s36 = sshll.u32 [#allocation6], 4
      %s37 = int_to_ptr.vmem [resolvable:$true] %s36
      %42 = dma.hbm_to_vmem [thread:$0]  %s35, 32768, %s37, [#allocation7], 256, 256, 16
    $region9: #{tpu_custom_call.1} parent=1 // pred_fallthru
      _
    // Predicated region
    $region10: #{tpu_custom_call.1} parent=1 // pred_check
      _
    $region11: #{tpu_custom_call.1} parent=1 // pred_check_branch
      %44 = sbr.rel (0) target = $region13
    $region12: #{tpu_custom_call.1} parent=1 // pred_region
      %46 = vsyncadd [#allocation7], 0
      %s48 = sshll.u32 %s2, 4
      %s49 = int_to_ptr.hbm [resolvable:$true] %s48
      %s50 = sshll.u32 [#allocation8], 4
      %s51 = int_to_ptr.vmem [resolvable:$true] %s50
      %53 = dma.hbm_to_vmem [thread:$0]  %s49, 64, %s51, [#allocation7]
    $region13: #{tpu_custom_call.1} parent=1 // pred_fallthru
      _
    // Predicated region
    $region14: #{tpu_custom_call.1} parent=1 // pred_check
      _
    $region15: #{tpu_custom_call.1} parent=1 // pred_check_branch
      %55 = sbr.rel (0) target = $region17
    $region16: #{tpu_custom_call.1} parent=1 // pred_region
      %57 = vsyncadd [#allocation10], 0
      %s58 = sshll.u32 %s3, 4
      %s59 = int_to_ptr.hbm [resolvable:$true] %s58
      %s60 = sshll.u32 [#allocation9], 4
      %s61 = int_to_ptr.vmem [resolvable:$true] %s60
      %66 = dma.hbm_to_vmem [thread:$0]  %s59, 4096, %s61, [#allocation10], 64, 64, 4
    $region17: #{tpu_custom_call.1} parent=1 // pred_fallthru
      _
    // Predicated region
    $region18: #{tpu_custom_call.1} parent=1 // pred_check
      _
    $region19: #{tpu_custom_call.1} parent=1 // pred_check_branch
      %68 = sbr.rel (0) target = $region21
    $region20: #{tpu_custom_call.1} parent=1 // pred_region
      _
    $region21: #{tpu_custom_call.1} parent=1 // pred_fallthru
      _
    // Predicated region
    $region22: #{tpu_custom_call.1} parent=1 // pred_check
      _
    $region23: #{tpu_custom_call.1} parent=1 // pred_check_branch
      %70 = sbr.rel (0) target = $region25
    $region24: #{tpu_custom_call.1} parent=1 // pred_region
      %72 = vsyncadd [#allocation10], 0
      %s73 = sshll.u32 %s5, 4
      %s74 = int_to_ptr.hbm [resolvable:$true] %s73
      %s75 = sshll.u32 [#allocation11], 4
      %s76 = int_to_ptr.vmem [resolvable:$true] %s75
      %81 = dma.hbm_to_vmem [thread:$0]  %s74, 1024, %s76, [#allocation10], 64, 64, 4
    $region25: #{tpu_custom_call.1} parent=1 // pred_fallthru
      _
    // Predicated region
    $region26: #{tpu_custom_call.1} parent=1 // pred_check
      _
    $region27: #{tpu_custom_call.1} parent=1 // pred_check_branch
      %83 = sbr.rel (0) target = $region29
    $region28: #{tpu_custom_call.1} parent=1 // pred_region
      _
    $region29: #{tpu_custom_call.1} parent=1 // pred_fallthru
      _
    // Predicated region
    $region30: #{tpu_custom_call.1} parent=1 // pred_check
      _
    $region31: #{tpu_custom_call.1} parent=1 // pred_check_branch
      %85 = sbr.rel (0) target = $region33
    $region32: #{tpu_custom_call.1} parent=1 // pred_region
      _
    $region33: #{tpu_custom_call.1} parent=1 // pred_fallthru
      _
    // Predicated region
    $region34: #{tpu_custom_call.1} parent=1 // pred_check
      _
    $region35: #{tpu_custom_call.1} parent=1 // pred_check_branch
      %87 = sbr.rel (0) target = $region37
    $region36: #{tpu_custom_call.1} parent=1 // pred_region
      _
    $region37: #{tpu_custom_call.1} parent=1 // pred_fallthru
      _
    // Predicated region
    $region38: #{tpu_custom_call.1} parent=1 // pred_check
      _
    $region39: #{tpu_custom_call.1} parent=1 // pred_check_branch
      %89 = sbr.rel (0) target = $region41
    $region40: #{tpu_custom_call.1} parent=1 // pred_region
      %91 = dma.done [#allocation5], 1024
    $region41: #{tpu_custom_call.1} parent=1 // pred_fallthru
      _
    // Predicated region
    $region42: #{tpu_custom_call.1} parent=1 // pred_check
      _
    $region43: #{tpu_custom_call.1} parent=1 // pred_check_branch
      %93 = sbr.rel (0) target = $region45
    $region44: #{tpu_custom_call.1} parent=1 // pred_region
      %95 = dma.done [#allocation7], 32768
    $region45: #{tpu_custom_call.1} parent=1 // pred_fallthru
      _
    // Predicated region
    $region46: #{tpu_custom_call.1} parent=1 // pred_check
      _
    $region47: #{tpu_custom_call.1} parent=1 // pred_check_branch
      %97 = sbr.rel (0) target = $region49
    $region48: #{tpu_custom_call.1} parent=1 // pred_region
      %99 = dma.done [#allocation7], 64
    $region49: #{tpu_custom_call.1} parent=1 // pred_fallthru
      _
    // Predicated region
    $region50: #{tpu_custom_call.1} parent=1 // pred_check
      _
    $region51: #{tpu_custom_call.1} parent=1 // pred_check_branch
      %101 = sbr.rel (0) target = $region53
    $region52: #{tpu_custom_call.1} parent=1 // pred_region
      %103 = dma.done [#allocation10], 4096
    $region53: #{tpu_custom_call.1} parent=1 // pred_fallthru
      _
    // Predicated region
    $region54: #{tpu_custom_call.1} parent=1 // pred_check
      _
    $region55: #{tpu_custom_call.1} parent=1 // pred_check_branch
      %105 = sbr.rel (0) target = $region57
    $region56: #{tpu_custom_call.1} parent=1 // pred_region
      %107 = dma.done [#allocation10], 1024
    $region57: #{tpu_custom_call.1} parent=1 // pred_fallthru
      _
    %p108 = scmp.eq.s32.totalorder 0, 0
    // Predicated region
    $region58: #{tpu_custom_call.1} parent=1 // pred_check
      %p109 = pneg %p108
    $region59: #{tpu_custom_call.1} parent=1 // pred_check_branch
      %111 = sbr.rel (%p109) target = $region61
    $region60: #{tpu_custom_call.1} parent=1 // pred_region
      %112 = vst [vmem:[#allocation2] sm:$0xff] 0.0
      %113 = vst [vmem:[#allocation2 + $0x8] sm:$0xff] 0.0
      %114 = vst [vmem:[#allocation2 + $0x10] sm:$0xff] 0.0
      %115 = vst [vmem:[#allocation2 + $0x18] sm:$0xff] 0.0
    $region61: #{tpu_custom_call.1} parent=1 // pred_fallthru
      _
    %v116 = vld [vmem:[#allocation2] sm:$0xff]
    %v117 = vld [vmem:[#allocation2 + $0x8] sm:$0xff]
    %v118 = vld [vmem:[#allocation2 + $0x10] sm:$0xff]
    %v119 = vld [vmem:[#allocation2 + $0x18] sm:$0xff]
    %v120 = vld [vmem:[#allocation4] sm:$0xff]
    %v121 = vld [vmem:[#allocation4 + $0x8] sm:$0xff]
    %v122 = vld [vmem:[#allocation4 + $0x10] sm:$0xff]
    %v123 = vld [vmem:[#allocation4 + $0x18] sm:$0xff]
    %v124 = vld [vmem:[#allocation4 + $0x20] sm:$0xff]
    %v125 = vld [vmem:[#allocation4 + $0x28] sm:$0xff]
    %v126 = vld [vmem:[#allocation4 + $0x30] sm:$0xff]
    %v127 = vld [vmem:[#allocation4 + $0x38] sm:$0xff]
    %v128 = vpack.c.bf16 %v120, %v120
    %v129 = vpack.c.bf16 %v121, %v121
    %v130 = vpack.c.bf16 %v122, %v122
    %v131 = vpack.c.bf16 %v123, %v123
    %v132 = vpack.c.bf16 %v124, %v124
    %v133 = vpack.c.bf16 %v125, %v125
    %v134 = vpack.c.bf16 %v126, %v126
    %v135 = vpack.c.bf16 %v127, %v127
    %v136 = vld [vmem:[#allocation6] sm:$0xff]
    %v137 = vld [vmem:[#allocation6 + $0x8] sm:$0xff]
    %v138 = vld [vmem:[#allocation6 + $0x10] sm:$0xff]
    %v139 = vld [vmem:[#allocation6 + $0x18] sm:$0xff]
    %v140 = vld [vmem:[#allocation6 + $0x20] sm:$0xff]
    %v141 = vld [vmem:[#allocation6 + $0x28] sm:$0xff]
    %v142 = vld [vmem:[#allocation6 + $0x30] sm:$0xff]
    %v143 = vld [vmem:[#allocation6 + $0x38] sm:$0xff]
    %v144 = vld [vmem:[#allocation6 + $0x40] sm:$0xff]
    %v145 = vld [vmem:[#allocation6 + $0x48] sm:$0xff]
    %v146 = vld [vmem:[#allocation6 + $0x50] sm:$0xff]
    %v147 = vld [vmem:[#allocation6 + $0x58] sm:$0xff]
    %v148 = vld [vmem:[#allocation6 + $0x60] sm:$0xff]
    %v149 = vld [vmem:[#allocation6 + $0x68] sm:$0xff]
    %v150 = vld [vmem:[#allocation6 + $0x70] sm:$0xff]
    %v151 = vld [vmem:[#allocation6 + $0x78] sm:$0xff]
    %v152 = vld [vmem:[#allocation6 + $0x80] sm:$0xff]
    %v153 = vld [vmem:[#allocation6 + $0x88] sm:$0xff]
    %v154 = vld [vmem:[#allocation6 + $0x90] sm:$0xff]
    %v155 = vld [vmem:[#allocation6 + $0x98] sm:$0xff]
    %v156 = vld [vmem:[#allocation6 + $0xa0] sm:$0xff]
    %v157 = vld [vmem:[#allocation6 + $0xa8] sm:$0xff]
    %v158 = vld [vmem:[#allocation6 + $0xb0] sm:$0xff]
    %v159 = vld [vmem:[#allocation6 + $0xb8] sm:$0xff]
    %v160 = vld [vmem:[#allocation6 + $0xc0] sm:$0xff]
    %v161 = vld [vmem:[#allocation6 + $0xc8] sm:$0xff]
    %v162 = vld [vmem:[#allocation6 + $0xd0] sm:$0xff]
    %v163 = vld [vmem:[#allocation6 + $0xd8] sm:$0xff]
    %v164 = vld [vmem:[#allocation6 + $0xe0] sm:$0xff]
    %v165 = vld [vmem:[#allocation6 + $0xe8] sm:$0xff]
    %v166 = vld [vmem:[#allocation6 + $0xf0] sm:$0xff]
    %v167 = vld [vmem:[#allocation6 + $0xf8] sm:$0xff]
    %v168 = vld [vmem:[#allocation6 + $0x100] sm:$0xff]
    %v169 = vld [vmem:[#allocation6 + $0x108] sm:$0xff]
    %v170 = vld [vmem:[#allocation6 + $0x110] sm:$0xff]
    %v171 = vld [vmem:[#allocation6 + $0x118] sm:$0xff]
    %v172 = vld [vmem:[#allocation6 + $0x120] sm:$0xff]
    %v173 = vld [vmem:[#allocation6 + $0x128] sm:$0xff]
    %v174 = vld [vmem:[#allocation6 + $0x130] sm:$0xff]
    %v175 = vld [vmem:[#allocation6 + $0x138] sm:$0xff]
    %v176 = vld [vmem:[#allocation6 + $0x140] sm:$0xff]
    %v177 = vld [vmem:[#allocation6 + $0x148] sm:$0xff]
    %v178 = vld [vmem:[#allocation6 + $0x150] sm:$0xff]
    %v179 = vld [vmem:[#allocation6 + $0x158] sm:$0xff]
    %v180 = vld [vmem:[#allocation6 + $0x160] sm:$0xff]
    %v181 = vld [vmem:[#allocation6 + $0x168] sm:$0xff]
    %v182 = vld [vmem:[#allocation6 + $0x170] sm:$0xff]
    %v183 = vld [vmem:[#allocation6 + $0x178] sm:$0xff]
    %v184 = vld [vmem:[#allocation6 + $0x180] sm:$0xff]
    %v185 = vld [vmem:[#allocation6 + $0x188] sm:$0xff]
    %v186 = vld [vmem:[#allocation6 + $0x190] sm:$0xff]
    %v187 = vld [vmem:[#allocation6 + $0x198] sm:$0xff]
    %v188 = vld [vmem:[#allocation6 + $0x1a0] sm:$0xff]
    %v189 = vld [vmem:[#allocation6 + $0x1a8] sm:$0xff]
    %v190 = vld [vmem:[#allocation6 + $0x1b0] sm:$0xff]
    %v191 = vld [vmem:[#allocation6 + $0x1b8] sm:$0xff]
    %v192 = vld [vmem:[#allocation6 + $0x1c0] sm:$0xff]
    %v193 = vld [vmem:[#allocation6 + $0x1c8] sm:$0xff]
    %v194 = vld [vmem:[#allocation6 + $0x1d0] sm:$0xff]
    %v195 = vld [vmem:[#allocation6 + $0x1d8] sm:$0xff]
    %v196 = vld [vmem:[#allocation6 + $0x1e0] sm:$0xff]
    %v197 = vld [vmem:[#allocation6 + $0x1e8] sm:$0xff]
    %v198 = vld [vmem:[#allocation6 + $0x1f0] sm:$0xff]
    %v199 = vld [vmem:[#allocation6 + $0x1f8] sm:$0xff]
    %v200 = vld [vmem:[#allocation6 + $0x200] sm:$0xff]
    %v201 = vld [vmem:[#allocation6 + $0x208] sm:$0xff]
    %v202 = vld [vmem:[#allocation6 + $0x210] sm:$0xff]
    %v203 = vld [vmem:[#allocation6 + $0x218] sm:$0xff]
    %v204 = vld [vmem:[#allocation6 + $0x220] sm:$0xff]
    %v205 = vld [vmem:[#allocation6 + $0x228] sm:$0xff]
    %v206 = vld [vmem:[#allocation6 + $0x230] sm:$0xff]
    %v207 = vld [vmem:[#allocation6 + $0x238] sm:$0xff]
    %v208 = vld [vmem:[#allocation6 + $0x240] sm:$0xff]
    %v209 = vld [vmem:[#allocation6 + $0x248] sm:$0xff]
    %v210 = vld [vmem:[#allocation6 + $0x250] sm:$0xff]
    %v211 = vld [vmem:[#allocation6 + $0x258] sm:$0xff]
    %v212 = vld [vmem:[#allocation6 + $0x260] sm:$0xff]
    %v213 = vld [vmem:[#allocation6 + $0x268] sm:$0xff]
    %v214 = vld [vmem:[#allocation6 + $0x270] sm:$0xff]
    %v215 = vld [vmem:[#allocation6 + $0x278] sm:$0xff]
    %v216 = vld [vmem:[#allocation6 + $0x280] sm:$0xff]
    %v217 = vld [vmem:[#allocation6 + $0x288] sm:$0xff]
    %v218 = vld [vmem:[#allocation6 + $0x290] sm:$0xff]
    %v219 = vld [vmem:[#allocation6 + $0x298] sm:$0xff]
    %v220 = vld [vmem:[#allocation6 + $0x2a0] sm:$0xff]
    %v221 = vld [vmem:[#allocation6 + $0x2a8] sm:$0xff]
    %v222 = vld [vmem:[#allocation6 + $0x2b0] sm:$0xff]
    %v223 = vld [vmem:[#allocation6 + $0x2b8] sm:$0xff]
    %v224 = vld [vmem:[#allocation6 + $0x2c0] sm:$0xff]
    %v225 = vld [vmem:[#allocation6 + $0x2c8] sm:$0xff]
    %v226 = vld [vmem:[#allocation6 + $0x2d0] sm:$0xff]
    %v227 = vld [vmem:[#allocation6 + $0x2d8] sm:$0xff]
    %v228 = vld [vmem:[#allocation6 + $0x2e0] sm:$0xff]
    %v229 = vld [vmem:[#allocation6 + $0x2e8] sm:$0xff]
    %v230 = vld [vmem:[#allocation6 + $0x2f0] sm:$0xff]
    %v231 = vld [vmem:[#allocation6 + $0x2f8] sm:$0xff]
    %v232 = vld [vmem:[#allocation6 + $0x300] sm:$0xff]
    %v233 = vld [vmem:[#allocation6 + $0x308] sm:$0xff]
    %v234 = vld [vmem:[#allocation6 + $0x310] sm:$0xff]
    %v235 = vld [vmem:[#allocation6 + $0x318] sm:$0xff]
    %v236 = vld [vmem:[#allocation6 + $0x320] sm:$0xff]
    %v237 = vld [vmem:[#allocation6 + $0x328] sm:$0xff]
    %v238 = vld [vmem:[#allocation6 + $0x330] sm:$0xff]
    %v239 = vld [vmem:[#allocation6 + $0x338] sm:$0xff]
    %v240 = vld [vmem:[#allocation6 + $0x340] sm:$0xff]
    %v241 = vld [vmem:[#allocation6 + $0x348] sm:$0xff]
    %v242 = vld [vmem:[#allocation6 + $0x350] sm:$0xff]
    %v243 = vld [vmem:[#allocation6 + $0x358] sm:$0xff]
    %v244 = vld [vmem:[#allocation6 + $0x360] sm:$0xff]
    %v245 = vld [vmem:[#allocation6 + $0x368] sm:$0xff]
    %v246 = vld [vmem:[#allocation6 + $0x370] sm:$0xff]
    %v247 = vld [vmem:[#allocation6 + $0x378] sm:$0xff]
    %v248 = vld [vmem:[#allocation6 + $0x380] sm:$0xff]
    %v249 = vld [vmem:[#allocation6 + $0x388] sm:$0xff]
    %v250 = vld [vmem:[#allocation6 + $0x390] sm:$0xff]
    %v251 = vld [vmem:[#allocation6 + $0x398] sm:$0xff]
    %v252 = vld [vmem:[#allocation6 + $0x3a0] sm:$0xff]
    %v253 = vld [vmem:[#allocation6 + $0x3a8] sm:$0xff]
    %v254 = vld [vmem:[#allocation6 + $0x3b0] sm:$0xff]
    %v255 = vld [vmem:[#allocation6 + $0x3b8] sm:$0xff]
    %v256 = vld [vmem:[#allocation6 + $0x3c0] sm:$0xff]
    %v257 = vld [vmem:[#allocation6 + $0x3c8] sm:$0xff]
    %v258 = vld [vmem:[#allocation6 + $0x3d0] sm:$0xff]
    %v259 = vld [vmem:[#allocation6 + $0x3d8] sm:$0xff]
    %v260 = vld [vmem:[#allocation6 + $0x3e0] sm:$0xff]
    %v261 = vld [vmem:[#allocation6 + $0x3e8] sm:$0xff]
    %v262 = vld [vmem:[#allocation6 + $0x3f0] sm:$0xff]
    %v263 = vld [vmem:[#allocation6 + $0x3f8] sm:$0xff]
    %v264 = vld [vmem:[#allocation6 + $0x400] sm:$0xff]
    %v265 = vld [vmem:[#allocation6 + $0x408] sm:$0xff]
    %v266 = vld [vmem:[#allocation6 + $0x410] sm:$0xff]
    %v267 = vld [vmem:[#allocation6 + $0x418] sm:$0xff]
    %v268 = vld [vmem:[#allocation6 + $0x420] sm:$0xff]
    %v269 = vld [vmem:[#allocation6 + $0x428] sm:$0xff]
    %v270 = vld [vmem:[#allocation6 + $0x430] sm:$0xff]
    %v271 = vld [vmem:[#allocation6 + $0x438] sm:$0xff]
    %v272 = vld [vmem:[#allocation6 + $0x440] sm:$0xff]
    %v273 = vld [vmem:[#allocation6 + $0x448] sm:$0xff]
    %v274 = vld [vmem:[#allocation6 + $0x450] sm:$0xff]
    %v275 = vld [vmem:[#allocation6 + $0x458] sm:$0xff]
    %v276 = vld [vmem:[#allocation6 + $0x460] sm:$0xff]
    %v277 = vld [vmem:[#allocation6 + $0x468] sm:$0xff]
    %v278 = vld [vmem:[#allocation6 + $0x470] sm:$0xff]
    %v279 = vld [vmem:[#allocation6 + $0x478] sm:$0xff]
    %v280 = vld [vmem:[#allocation6 + $0x480] sm:$0xff]
    %v281 = vld [vmem:[#allocation6 + $0x488] sm:$0xff]
    %v282 = vld [vmem:[#allocation6 + $0x490] sm:$0xff]
    %v283 = vld [vmem:[#allocation6 + $0x498] sm:$0xff]
    %v284 = vld [vmem:[#allocation6 + $0x4a0] sm:$0xff]
    %v285 = vld [vmem:[#allocation6 + $0x4a8] sm:$0xff]
    %v286 = vld [vmem:[#allocation6 + $0x4b0] sm:$0xff]
    %v287 = vld [vmem:[#allocation6 + $0x4b8] sm:$0xff]
    %v288 = vld [vmem:[#allocation6 + $0x4c0] sm:$0xff]
    %v289 = vld [vmem:[#allocation6 + $0x4c8] sm:$0xff]
    %v290 = vld [vmem:[#allocation6 + $0x4d0] sm:$0xff]
    %v291 = vld [vmem:[#allocation6 + $0x4d8] sm:$0xff]
    %v292 = vld [vmem:[#allocation6 + $0x4e0] sm:$0xff]
    %v293 = vld [vmem:[#allocation6 + $0x4e8] sm:$0xff]
    %v294 = vld [vmem:[#allocation6 + $0x4f0] sm:$0xff]
    %v295 = vld [vmem:[#allocation6 + $0x4f8] sm:$0xff]
    %v296 = vld [vmem:[#allocation6 + $0x500] sm:$0xff]
    %v297 = vld [vmem:[#allocation6 + $0x508] sm:$0xff]
    %v298 = vld [vmem:[#allocation6 + $0x510] sm:$0xff]
    %v299 = vld [vmem:[#allocation6 + $0x518] sm:$0xff]
    %v300 = vld [vmem:[#allocation6 + $0x520] sm:$0xff]
    %v301 = vld [vmem:[#allocation6 + $0x528] sm:$0xff]
    %v302 = vld [vmem:[#allocation6 + $0x530] sm:$0xff]
    %v303 = vld [vmem:[#allocation6 + $0x538] sm:$0xff]
    %v304 = vld [vmem:[#allocation6 + $0x540] sm:$0xff]
    %v305 = vld [vmem:[#allocation6 + $0x548] sm:$0xff]
    %v306 = vld [vmem:[#allocation6 + $0x550] sm:$0xff]
    %v307 = vld [vmem:[#allocation6 + $0x558] sm:$0xff]
    %v308 = vld [vmem:[#allocation6 + $0x560] sm:$0xff]
    %v309 = vld [vmem:[#allocation6 + $0x568] sm:$0xff]
    %v310 = vld [vmem:[#allocation6 + $0x570] sm:$0xff]
    %v311 = vld [vmem:[#allocation6 + $0x578] sm:$0xff]
    %v312 = vld [vmem:[#allocation6 + $0x580] sm:$0xff]
    %v313 = vld [vmem:[#allocation6 + $0x588] sm:$0xff]
    %v314 = vld [vmem:[#allocation6 + $0x590] sm:$0xff]
    %v315 = vld [vmem:[#allocation6 + $0x598] sm:$0xff]
    %v316 = vld [vmem:[#allocation6 + $0x5a0] sm:$0xff]
    %v317 = vld [vmem:[#allocation6 + $0x5a8] sm:$0xff]
    %v318 = vld [vmem:[#allocation6 + $0x5b0] sm:$0xff]
    %v319 = vld [vmem:[#allocation6 + $0x5b8] sm:$0xff]
    %v320 = vld [vmem:[#allocation6 + $0x5c0] sm:$0xff]
    %v321 = vld [vmem:[#allocation6 + $0x5c8] sm:$0xff]
    %v322 = vld [vmem:[#allocation6 + $0x5d0] sm:$0xff]
    %v323 = vld [vmem:[#allocation6 + $0x5d8] sm:$0xff]
    %v324 = vld [vmem:[#allocation6 + $0x5e0] sm:$0xff]
    %v325 = vld [vmem:[#allocation6 + $0x5e8] sm:$0xff]
    %v326 = vld [vmem:[#allocation6 + $0x5f0] sm:$0xff]
    %v327 = vld [vmem:[#allocation6 + $0x5f8] sm:$0xff]
    %v328 = vld [vmem:[#allocation6 + $0x600] sm:$0xff]
    %v329 = vld [vmem:[#allocation6 + $0x608] sm:$0xff]
    %v330 = vld [vmem:[#allocation6 + $0x610] sm:$0xff]
    %v331 = vld [vmem:[#allocation6 + $0x618] sm:$0xff]
    %v332 = vld [vmem:[#allocation6 + $0x620] sm:$0xff]
    %v333 = vld [vmem:[#allocation6 + $0x628] sm:$0xff]
    %v334 = vld [vmem:[#allocation6 + $0x630] sm:$0xff]
    %v335 = vld [vmem:[#allocation6 + $0x638] sm:$0xff]
    %v336 = vld [vmem:[#allocation6 + $0x640] sm:$0xff]
    %v337 = vld [vmem:[#allocation6 + $0x648] sm:$0xff]
    %v338 = vld [vmem:[#allocation6 + $0x650] sm:$0xff]
    %v339 = vld [vmem:[#allocation6 + $0x658] sm:$0xff]
    %v340 = vld [vmem:[#allocation6 + $0x660] sm:$0xff]
    %v341 = vld [vmem:[#allocation6 + $0x668] sm:$0xff]
    %v342 = vld [vmem:[#allocation6 + $0x670] sm:$0xff]
    %v343 = vld [vmem:[#allocation6 + $0x678] sm:$0xff]
    %v344 = vld [vmem:[#allocation6 + $0x680] sm:$0xff]
    %v345 = vld [vmem:[#allocation6 + $0x688] sm:$0xff]
    %v346 = vld [vmem:[#allocation6 + $0x690] sm:$0xff]
    %v347 = vld [vmem:[#allocation6 + $0x698] sm:$0xff]
    %v348 = vld [vmem:[#allocation6 + $0x6a0] sm:$0xff]
    %v349 = vld [vmem:[#allocation6 + $0x6a8] sm:$0xff]
    %v350 = vld [vmem:[#allocation6 + $0x6b0] sm:$0xff]
    %v351 = vld [vmem:[#allocation6 + $0x6b8] sm:$0xff]
    %v352 = vld [vmem:[#allocation6 + $0x6c0] sm:$0xff]
    %v353 = vld [vmem:[#allocation6 + $0x6c8] sm:$0xff]
    %v354 = vld [vmem:[#allocation6 + $0x6d0] sm:$0xff]
    %v355 = vld [vmem:[#allocation6 + $0x6d8] sm:$0xff]
    %v356 = vld [vmem:[#allocation6 + $0x6e0] sm:$0xff]
    %v357 = vld [vmem:[#allocation6 + $0x6e8] sm:$0xff]
    %v358 = vld [vmem:[#allocation6 + $0x6f0] sm:$0xff]
    %v359 = vld [vmem:[#allocation6 + $0x6f8] sm:$0xff]
    %v360 = vld [vmem:[#allocation6 + $0x700] sm:$0xff]
    %v361 = vld [vmem:[#allocation6 + $0x708] sm:$0xff]
    %v362 = vld [vmem:[#allocation6 + $0x710] sm:$0xff]
    %v363 = vld [vmem:[#allocation6 + $0x718] sm:$0xff]
    %v364 = vld [vmem:[#allocation6 + $0x720] sm:$0xff]
    %v365 = vld [vmem:[#allocation6 + $0x728] sm:$0xff]
    %v366 = vld [vmem:[#allocation6 + $0x730] sm:$0xff]
    %v367 = vld [vmem:[#allocation6 + $0x738] sm:$0xff]
    %v368 = vld [vmem:[#allocation6 + $0x740] sm:$0xff]
    %v369 = vld [vmem:[#allocation6 + $0x748] sm:$0xff]
    %v370 = vld [vmem:[#allocation6 + $0x750] sm:$0xff]
    %v371 = vld [vmem:[#allocation6 + $0x758] sm:$0xff]
    %v372 = vld [vmem:[#allocation6 + $0x760] sm:$0xff]
    %v373 = vld [vmem:[#allocation6 + $0x768] sm:$0xff]
    %v374 = vld [vmem:[#allocation6 + $0x770] sm:$0xff]
    %v375 = vld [vmem:[#allocation6 + $0x778] sm:$0xff]
    %v376 = vld [vmem:[#allocation6 + $0x780] sm:$0xff]
    %v377 = vld [vmem:[#allocation6 + $0x788] sm:$0xff]
    %v378 = vld [vmem:[#allocation6 + $0x790] sm:$0xff]
    %v379 = vld [vmem:[#allocation6 + $0x798] sm:$0xff]
    %v380 = vld [vmem:[#allocation6 + $0x7a0] sm:$0xff]
    %v381 = vld [vmem:[#allocation6 + $0x7a8] sm:$0xff]
    %v382 = vld [vmem:[#allocation6 + $0x7b0] sm:$0xff]
    %v383 = vld [vmem:[#allocation6 + $0x7b8] sm:$0xff]
    %v384 = vld [vmem:[#allocation6 + $0x7c0] sm:$0xff]
    %v385 = vld [vmem:[#allocation6 + $0x7c8] sm:$0xff]
    %v386 = vld [vmem:[#allocation6 + $0x7d0] sm:$0xff]
    %v387 = vld [vmem:[#allocation6 + $0x7d8] sm:$0xff]
    %v388 = vld [vmem:[#allocation6 + $0x7e0] sm:$0xff]
    %v389 = vld [vmem:[#allocation6 + $0x7e8] sm:$0xff]
    %v390 = vld [vmem:[#allocation6 + $0x7f0] sm:$0xff]
    %v391 = vld [vmem:[#allocation6 + $0x7f8] sm:$0xff]
    %v648 = vunpack.c.l.b16 %v136
    %v649 = vunpack.c.h.b16 %v136
    %v650 = vunpack.c.l.b16 %v137
    %v651 = vunpack.c.h.b16 %v137
    %v652 = vunpack.c.l.b16 %v138
    %v653 = vunpack.c.h.b16 %v138
    %v654 = vunpack.c.l.b16 %v139
    %v655 = vunpack.c.h.b16 %v139
    %v656 = vunpack.c.l.b16 %v140
    %v657 = vunpack.c.h.b16 %v140
    %v658 = vunpack.c.l.b16 %v141
    %v659 = vunpack.c.h.b16 %v141
    %v660 = vunpack.c.l.b16 %v142
    %v661 = vunpack.c.h.b16 %v142
    %v662 = vunpack.c.l.b16 %v143
    %v663 = vunpack.c.h.b16 %v143
    %v664 = vunpack.c.l.b16 %v144
    %v665 = vunpack.c.h.b16 %v144
    %v666 = vunpack.c.l.b16 %v145
    %v667 = vunpack.c.h.b16 %v145
    %v668 = vunpack.c.l.b16 %v146
    %v669 = vunpack.c.h.b16 %v146
    %v670 = vunpack.c.l.b16 %v147
    %v671 = vunpack.c.h.b16 %v147
    %v672 = vunpack.c.l.b16 %v148
    %v673 = vunpack.c.h.b16 %v148
    %v674 = vunpack.c.l.b16 %v149
    %v675 = vunpack.c.h.b16 %v149
    %v676 = vunpack.c.l.b16 %v150
    %v677 = vunpack.c.h.b16 %v150
    %v678 = vunpack.c.l.b16 %v151
    %v679 = vunpack.c.h.b16 %v151
    %v680 = vunpack.c.l.b16 %v152
    %v681 = vunpack.c.h.b16 %v152
    %v682 = vunpack.c.l.b16 %v153
    %v683 = vunpack.c.h.b16 %v153
    %v684 = vunpack.c.l.b16 %v154
    %v685 = vunpack.c.h.b16 %v154
    %v686 = vunpack.c.l.b16 %v155
    %v687 = vunpack.c.h.b16 %v155
    %v688 = vunpack.c.l.b16 %v156
    %v689 = vunpack.c.h.b16 %v156
    %v690 = vunpack.c.l.b16 %v157
    %v691 = vunpack.c.h.b16 %v157
    %v692 = vunpack.c.l.b16 %v158
    %v693 = vunpack.c.h.b16 %v158
    %v694 = vunpack.c.l.b16 %v159
    %v695 = vunpack.c.h.b16 %v159
    %v696 = vunpack.c.l.b16 %v160
    %v697 = vunpack.c.h.b16 %v160
    %v698 = vunpack.c.l.b16 %v161
    %v699 = vunpack.c.h.b16 %v161
    %v700 = vunpack.c.l.b16 %v162
    %v701 = vunpack.c.h.b16 %v162
    %v702 = vunpack.c.l.b16 %v163
    %v703 = vunpack.c.h.b16 %v163
    %v704 = vunpack.c.l.b16 %v164
    %v705 = vunpack.c.h.b16 %v164
    %v706 = vunpack.c.l.b16 %v165
    %v707 = vunpack.c.h.b16 %v165
    %v708 = vunpack.c.l.b16 %v166
    %v709 = vunpack.c.h.b16 %v166
    %v710 = vunpack.c.l.b16 %v167
    %v711 = vunpack.c.h.b16 %v167
    %v712 = vunpack.c.l.b16 %v168
    %v713 = vunpack.c.h.b16 %v168
    %v714 = vunpack.c.l.b16 %v169
    %v715 = vunpack.c.h.b16 %v169
    %v716 = vunpack.c.l.b16 %v170
    %v717 = vunpack.c.h.b16 %v170
    %v718 = vunpack.c.l.b16 %v171
    %v719 = vunpack.c.h.b16 %v171
    %v720 = vunpack.c.l.b16 %v172
    %v721 = vunpack.c.h.b16 %v172
    %v722 = vunpack.c.l.b16 %v173
    %v723 = vunpack.c.h.b16 %v173
    %v724 = vunpack.c.l.b16 %v174
    %v725 = vunpack.c.h.b16 %v174
    %v726 = vunpack.c.l.b16 %v175
    %v727 = vunpack.c.h.b16 %v175
    %v728 = vunpack.c.l.b16 %v176
    %v729 = vunpack.c.h.b16 %v176
    %v730 = vunpack.c.l.b16 %v177
    %v731 = vunpack.c.h.b16 %v177
    %v732 = vunpack.c.l.b16 %v178
    %v733 = vunpack.c.h.b16 %v178
    %v734 = vunpack.c.l.b16 %v179
    %v735 = vunpack.c.h.b16 %v179
    %v736 = vunpack.c.l.b16 %v180
    %v737 = vunpack.c.h.b16 %v180
    %v738 = vunpack.c.l.b16 %v181
    %v739 = vunpack.c.h.b16 %v181
    %v740 = vunpack.c.l.b16 %v182
    %v741 = vunpack.c.h.b16 %v182
    %v742 = vunpack.c.l.b16 %v183
    %v743 = vunpack.c.h.b16 %v183
    %v744 = vunpack.c.l.b16 %v184
    %v745 = vunpack.c.h.b16 %v184
    %v746 = vunpack.c.l.b16 %v185
    %v747 = vunpack.c.h.b16 %v185
    %v748 = vunpack.c.l.b16 %v186
    %v749 = vunpack.c.h.b16 %v186
    %v750 = vunpack.c.l.b16 %v187
    %v751 = vunpack.c.h.b16 %v187
    %v752 = vunpack.c.l.b16 %v188
    %v753 = vunpack.c.h.b16 %v188
    %v754 = vunpack.c.l.b16 %v189
    %v755 = vunpack.c.h.b16 %v189
    %v756 = vunpack.c.l.b16 %v190
    %v757 = vunpack.c.h.b16 %v190
    %v758 = vunpack.c.l.b16 %v191
    %v759 = vunpack.c.h.b16 %v191
    %v760 = vunpack.c.l.b16 %v192
    %v761 = vunpack.c.h.b16 %v192
    %v762 = vunpack.c.l.b16 %v193
    %v763 = vunpack.c.h.b16 %v193
    %v764 = vunpack.c.l.b16 %v194
    %v765 = vunpack.c.h.b16 %v194
    %v766 = vunpack.c.l.b16 %v195
    %v767 = vunpack.c.h.b16 %v195
    %v768 = vunpack.c.l.b16 %v196
    %v769 = vunpack.c.h.b16 %v196
    %v770 = vunpack.c.l.b16 %v197
    %v771 = vunpack.c.h.b16 %v197
    %v772 = vunpack.c.l.b16 %v198
    %v773 = vunpack.c.h.b16 %v198
    %v774 = vunpack.c.l.b16 %v199
    %v775 = vunpack.c.h.b16 %v199
    %v776 = vunpack.c.l.b16 %v200
    %v777 = vunpack.c.h.b16 %v200
    %v778 = vunpack.c.l.b16 %v201
    %v779 = vunpack.c.h.b16 %v201
    %v780 = vunpack.c.l.b16 %v202
    %v781 = vunpack.c.h.b16 %v202
    %v782 = vunpack.c.l.b16 %v203
    %v783 = vunpack.c.h.b16 %v203
    %v784 = vunpack.c.l.b16 %v204
    %v785 = vunpack.c.h.b16 %v204
    %v786 = vunpack.c.l.b16 %v205
    %v787 = vunpack.c.h.b16 %v205
    %v788 = vunpack.c.l.b16 %v206
    %v789 = vunpack.c.h.b16 %v206
    %v790 = vunpack.c.l.b16 %v207
    %v791 = vunpack.c.h.b16 %v207
    %v792 = vunpack.c.l.b16 %v208
    %v793 = vunpack.c.h.b16 %v208
    %v794 = vunpack.c.l.b16 %v209
    %v795 = vunpack.c.h.b16 %v209
    %v796 = vunpack.c.l.b16 %v210
    %v797 = vunpack.c.h.b16 %v210
    %v798 = vunpack.c.l.b16 %v211
    %v799 = vunpack.c.h.b16 %v211
    %v800 = vunpack.c.l.b16 %v212
    %v801 = vunpack.c.h.b16 %v212
    %v802 = vunpack.c.l.b16 %v213
    %v803 = vunpack.c.h.b16 %v213
    %v804 = vunpack.c.l.b16 %v214
    %v805 = vunpack.c.h.b16 %v214
    %v806 = vunpack.c.l.b16 %v215
    %v807 = vunpack.c.h.b16 %v215
    %v808 = vunpack.c.l.b16 %v216
    %v809 = vunpack.c.h.b16 %v216
    %v810 = vunpack.c.l.b16 %v217
    %v811 = vunpack.c.h.b16 %v217
    %v812 = vunpack.c.l.b16 %v218
    %v813 = vunpack.c.h.b16 %v218
    %v814 = vunpack.c.l.b16 %v219
    %v815 = vunpack.c.h.b16 %v219
    %v816 = vunpack.c.l.b16 %v220
    %v817 = vunpack.c.h.b16 %v220
    %v818 = vunpack.c.l.b16 %v221
    %v819 = vunpack.c.h.b16 %v221
    %v820 = vunpack.c.l.b16 %v222
    %v821 = vunpack.c.h.b16 %v222
    %v822 = vunpack.c.l.b16 %v223
    %v823 = vunpack.c.h.b16 %v223
    %v824 = vunpack.c.l.b16 %v224
    %v825 = vunpack.c.h.b16 %v224
    %v826 = vunpack.c.l.b16 %v225
    %v827 = vunpack.c.h.b16 %v225
    %v828 = vunpack.c.l.b16 %v226
    %v829 = vunpack.c.h.b16 %v226
    %v830 = vunpack.c.l.b16 %v227
    %v831 = vunpack.c.h.b16 %v227
    %v832 = vunpack.c.l.b16 %v228
    %v833 = vunpack.c.h.b16 %v228
    %v834 = vunpack.c.l.b16 %v229
    %v835 = vunpack.c.h.b16 %v229
    %v836 = vunpack.c.l.b16 %v230
    %v837 = vunpack.c.h.b16 %v230
    %v838 = vunpack.c.l.b16 %v231
    %v839 = vunpack.c.h.b16 %v231
    %v840 = vunpack.c.l.b16 %v232
    %v841 = vunpack.c.h.b16 %v232
    %v842 = vunpack.c.l.b16 %v233
    %v843 = vunpack.c.h.b16 %v233
    %v844 = vunpack.c.l.b16 %v234
    %v845 = vunpack.c.h.b16 %v234
    %v846 = vunpack.c.l.b16 %v235
    %v847 = vunpack.c.h.b16 %v235
    %v848 = vunpack.c.l.b16 %v236
    %v849 = vunpack.c.h.b16 %v236
    %v850 = vunpack.c.l.b16 %v237
    %v851 = vunpack.c.h.b16 %v237
    %v852 = vunpack.c.l.b16 %v238
    %v853 = vunpack.c.h.b16 %v238
    %v854 = vunpack.c.l.b16 %v239
    %v855 = vunpack.c.h.b16 %v239
    %v856 = vunpack.c.l.b16 %v240
    %v857 = vunpack.c.h.b16 %v240
    %v858 = vunpack.c.l.b16 %v241
    %v859 = vunpack.c.h.b16 %v241
    %v860 = vunpack.c.l.b16 %v242
    %v861 = vunpack.c.h.b16 %v242
    %v862 = vunpack.c.l.b16 %v243
    %v863 = vunpack.c.h.b16 %v243
    %v864 = vunpack.c.l.b16 %v244
    %v865 = vunpack.c.h.b16 %v244
    %v866 = vunpack.c.l.b16 %v245
    %v867 = vunpack.c.h.b16 %v245
    %v868 = vunpack.c.l.b16 %v246
    %v869 = vunpack.c.h.b16 %v246
    %v870 = vunpack.c.l.b16 %v247
    %v871 = vunpack.c.h.b16 %v247
    %v872 = vunpack.c.l.b16 %v248
    %v873 = vunpack.c.h.b16 %v248
    %v874 = vunpack.c.l.b16 %v249
    %v875 = vunpack.c.h.b16 %v249
    %v876 = vunpack.c.l.b16 %v250
    %v877 = vunpack.c.h.b16 %v250
    %v878 = vunpack.c.l.b16 %v251
    %v879 = vunpack.c.h.b16 %v251
    %v880 = vunpack.c.l.b16 %v252
    %v881 = vunpack.c.h.b16 %v252
    %v882 = vunpack.c.l.b16 %v253
    %v883 = vunpack.c.h.b16 %v253
    %v884 = vunpack.c.l.b16 %v254
    %v885 = vunpack.c.h.b16 %v254
    %v886 = vunpack.c.l.b16 %v255
    %v887 = vunpack.c.h.b16 %v255
    %v888 = vunpack.c.l.b16 %v256
    %v889 = vunpack.c.h.b16 %v256
    %v890 = vunpack.c.l.b16 %v257
    %v891 = vunpack.c.h.b16 %v257
    %v892 = vunpack.c.l.b16 %v258
    %v893 = vunpack.c.h.b16 %v258
    %v894 = vunpack.c.l.b16 %v259
    %v895 = vunpack.c.h.b16 %v259
    %v896 = vunpack.c.l.b16 %v260
    %v897 = vunpack.c.h.b16 %v260
    %v898 = vunpack.c.l.b16 %v261
    %v899 = vunpack.c.h.b16 %v261
    %v900 = vunpack.c.l.b16 %v262
    %v901 = vunpack.c.h.b16 %v262
    %v902 = vunpack.c.l.b16 %v263
    %v903 = vunpack.c.h.b16 %v263
    %v904 = vunpack.c.l.b16 %v264
    %v905 = vunpack.c.h.b16 %v264
    %v906 = vunpack.c.l.b16 %v265
    %v907 = vunpack.c.h.b16 %v265
    %v908 = vunpack.c.l.b16 %v266
    %v909 = vunpack.c.h.b16 %v266
    %v910 = vunpack.c.l.b16 %v267
    %v911 = vunpack.c.h.b16 %v267
    %v912 = vunpack.c.l.b16 %v268
    %v913 = vunpack.c.h.b16 %v268
    %v914 = vunpack.c.l.b16 %v269
    %v915 = vunpack.c.h.b16 %v269
    %v916 = vunpack.c.l.b16 %v270
    %v917 = vunpack.c.h.b16 %v270
    %v918 = vunpack.c.l.b16 %v271
    %v919 = vunpack.c.h.b16 %v271
    %v920 = vunpack.c.l.b16 %v272
    %v921 = vunpack.c.h.b16 %v272
    %v922 = vunpack.c.l.b16 %v273
    %v923 = vunpack.c.h.b16 %v273
    %v924 = vunpack.c.l.b16 %v274
    %v925 = vunpack.c.h.b16 %v274
    %v926 = vunpack.c.l.b16 %v275
    %v927 = vunpack.c.h.b16 %v275
    %v928 = vunpack.c.l.b16 %v276
    %v929 = vunpack.c.h.b16 %v276
    %v930 = vunpack.c.l.b16 %v277
    %v931 = vunpack.c.h.b16 %v277
    %v932 = vunpack.c.l.b16 %v278
    %v933 = vunpack.c.h.b16 %v278
    %v934 = vunpack.c.l.b16 %v279
    %v935 = vunpack.c.h.b16 %v279
    %v936 = vunpack.c.l.b16 %v280
    %v937 = vunpack.c.h.b16 %v280
    %v938 = vunpack.c.l.b16 %v281
    %v939 = vunpack.c.h.b16 %v281
    %v940 = vunpack.c.l.b16 %v282
    %v941 = vunpack.c.h.b16 %v282
    %v942 = vunpack.c.l.b16 %v283
    %v943 = vunpack.c.h.b16 %v283
    %v944 = vunpack.c.l.b16 %v284
    %v945 = vunpack.c.h.b16 %v284
    %v946 = vunpack.c.l.b16 %v285
    %v947 = vunpack.c.h.b16 %v285
    %v948 = vunpack.c.l.b16 %v286
    %v949 = vunpack.c.h.b16 %v286
    %v950 = vunpack.c.l.b16 %v287
    %v951 = vunpack.c.h.b16 %v287
    %v952 = vunpack.c.l.b16 %v288
    %v953 = vunpack.c.h.b16 %v288
    %v954 = vunpack.c.l.b16 %v289
    %v955 = vunpack.c.h.b16 %v289
    %v956 = vunpack.c.l.b16 %v290
    %v957 = vunpack.c.h.b16 %v290
    %v958 = vunpack.c.l.b16 %v291
    %v959 = vunpack.c.h.b16 %v291
    %v960 = vunpack.c.l.b16 %v292
    %v961 = vunpack.c.h.b16 %v292
    %v962 = vunpack.c.l.b16 %v293
    %v963 = vunpack.c.h.b16 %v293
    %v964 = vunpack.c.l.b16 %v294
    %v965 = vunpack.c.h.b16 %v294
    %v966 = vunpack.c.l.b16 %v295
    %v967 = vunpack.c.h.b16 %v295
    %v968 = vunpack.c.l.b16 %v296
    %v969 = vunpack.c.h.b16 %v296
    %v970 = vunpack.c.l.b16 %v297
    %v971 = vunpack.c.h.b16 %v297
    %v972 = vunpack.c.l.b16 %v298
    %v973 = vunpack.c.h.b16 %v298
    %v974 = vunpack.c.l.b16 %v299
    %v975 = vunpack.c.h.b16 %v299
    %v976 = vunpack.c.l.b16 %v300
    %v977 = vunpack.c.h.b16 %v300
    %v978 = vunpack.c.l.b16 %v301
    %v979 = vunpack.c.h.b16 %v301
    %v980 = vunpack.c.l.b16 %v302
    %v981 = vunpack.c.h.b16 %v302
    %v982 = vunpack.c.l.b16 %v303
    %v983 = vunpack.c.h.b16 %v303
    %v984 = vunpack.c.l.b16 %v304
    %v985 = vunpack.c.h.b16 %v304
    %v986 = vunpack.c.l.b16 %v305
    %v987 = vunpack.c.h.b16 %v305
    %v988 = vunpack.c.l.b16 %v306
    %v989 = vunpack.c.h.b16 %v306
    %v990 = vunpack.c.l.b16 %v307
    %v991 = vunpack.c.h.b16 %v307
    %v992 = vunpack.c.l.b16 %v308
    %v993 = vunpack.c.h.b16 %v308
    %v994 = vunpack.c.l.b16 %v309
    %v995 = vunpack.c.h.b16 %v309
    %v996 = vunpack.c.l.b16 %v310
    %v997 = vunpack.c.h.b16 %v310
    %v998 = vunpack.c.l.b16 %v311
    %v999 = vunpack.c.h.b16 %v311
    %v1000 = vunpack.c.l.b16 %v312
    %v1001 = vunpack.c.h.b16 %v312
    %v1002 = vunpack.c.l.b16 %v313
    %v1003 = vunpack.c.h.b16 %v313
    %v1004 = vunpack.c.l.b16 %v314
    %v1005 = vunpack.c.h.b16 %v314
    %v1006 = vunpack.c.l.b16 %v315
    %v1007 = vunpack.c.h.b16 %v315
    %v1008 = vunpack.c.l.b16 %v316
    %v1009 = vunpack.c.h.b16 %v316
    %v1010 = vunpack.c.l.b16 %v317
    %v1011 = vunpack.c.h.b16 %v317
    %v1012 = vunpack.c.l.b16 %v318
    %v1013 = vunpack.c.h.b16 %v318
    %v1014 = vunpack.c.l.b16 %v319
    %v1015 = vunpack.c.h.b16 %v319
    %v1016 = vunpack.c.l.b16 %v320
    %v1017 = vunpack.c.h.b16 %v320
    %v1018 = vunpack.c.l.b16 %v321
    %v1019 = vunpack.c.h.b16 %v321
    %v1020 = vunpack.c.l.b16 %v322
    %v1021 = vunpack.c.h.b16 %v322
    %v1022 = vunpack.c.l.b16 %v323
    %v1023 = vunpack.c.h.b16 %v323
    %v1024 = vunpack.c.l.b16 %v324
    %v1025 = vunpack.c.h.b16 %v324
    %v1026 = vunpack.c.l.b16 %v325
    %v1027 = vunpack.c.h.b16 %v325
    %v1028 = vunpack.c.l.b16 %v326
    %v1029 = vunpack.c.h.b16 %v326
    %v1030 = vunpack.c.l.b16 %v327
    %v1031 = vunpack.c.h.b16 %v327
    %v1032 = vunpack.c.l.b16 %v328
    %v1033 = vunpack.c.h.b16 %v328
    %v1034 = vunpack.c.l.b16 %v329
    %v1035 = vunpack.c.h.b16 %v329
    %v1036 = vunpack.c.l.b16 %v330
    %v1037 = vunpack.c.h.b16 %v330
    %v1038 = vunpack.c.l.b16 %v331
    %v1039 = vunpack.c.h.b16 %v331
    %v1040 = vunpack.c.l.b16 %v332
    %v1041 = vunpack.c.h.b16 %v332
    %v1042 = vunpack.c.l.b16 %v333
    %v1043 = vunpack.c.h.b16 %v333
    %v1044 = vunpack.c.l.b16 %v334
    %v1045 = vunpack.c.h.b16 %v334
    %v1046 = vunpack.c.l.b16 %v335
    %v1047 = vunpack.c.h.b16 %v335
    %v1048 = vunpack.c.l.b16 %v336
    %v1049 = vunpack.c.h.b16 %v336
    %v1050 = vunpack.c.l.b16 %v337
    %v1051 = vunpack.c.h.b16 %v337
    %v1052 = vunpack.c.l.b16 %v338
    %v1053 = vunpack.c.h.b16 %v338
    %v1054 = vunpack.c.l.b16 %v339
    %v1055 = vunpack.c.h.b16 %v339
    %v1056 = vunpack.c.l.b16 %v340
    %v1057 = vunpack.c.h.b16 %v340
    %v1058 = vunpack.c.l.b16 %v341
    %v1059 = vunpack.c.h.b16 %v341
    %v1060 = vunpack.c.l.b16 %v342
    %v1061 = vunpack.c.h.b16 %v342
    %v1062 = vunpack.c.l.b16 %v343
    %v1063 = vunpack.c.h.b16 %v343
    %v1064 = vunpack.c.l.b16 %v344
    %v1065 = vunpack.c.h.b16 %v344
    %v1066 = vunpack.c.l.b16 %v345
    %v1067 = vunpack.c.h.b16 %v345
    %v1068 = vunpack.c.l.b16 %v346
    %v1069 = vunpack.c.h.b16 %v346
    %v1070 = vunpack.c.l.b16 %v347
    %v1071 = vunpack.c.h.b16 %v347
    %v1072 = vunpack.c.l.b16 %v348
    %v1073 = vunpack.c.h.b16 %v348
    %v1074 = vunpack.c.l.b16 %v349
    %v1075 = vunpack.c.h.b16 %v349
    %v1076 = vunpack.c.l.b16 %v350
    %v1077 = vunpack.c.h.b16 %v350
    %v1078 = vunpack.c.l.b16 %v351
    %v1079 = vunpack.c.h.b16 %v351
    %v1080 = vunpack.c.l.b16 %v352
    %v1081 = vunpack.c.h.b16 %v352
    %v1082 = vunpack.c.l.b16 %v353
    %v1083 = vunpack.c.h.b16 %v353
    %v1084 = vunpack.c.l.b16 %v354
    %v1085 = vunpack.c.h.b16 %v354
    %v1086 = vunpack.c.l.b16 %v355
    %v1087 = vunpack.c.h.b16 %v355
    %v1088 = vunpack.c.l.b16 %v356
    %v1089 = vunpack.c.h.b16 %v356
    %v1090 = vunpack.c.l.b16 %v357
    %v1091 = vunpack.c.h.b16 %v357
    %v1092 = vunpack.c.l.b16 %v358
    %v1093 = vunpack.c.h.b16 %v358
    %v1094 = vunpack.c.l.b16 %v359
    %v1095 = vunpack.c.h.b16 %v359
    %v1096 = vunpack.c.l.b16 %v360
    %v1097 = vunpack.c.h.b16 %v360
    %v1098 = vunpack.c.l.b16 %v361
    %v1099 = vunpack.c.h.b16 %v361
    %v1100 = vunpack.c.l.b16 %v362
    %v1101 = vunpack.c.h.b16 %v362
    %v1102 = vunpack.c.l.b16 %v363
    %v1103 = vunpack.c.h.b16 %v363
    %v1104 = vunpack.c.l.b16 %v364
    %v1105 = vunpack.c.h.b16 %v364
    %v1106 = vunpack.c.l.b16 %v365
    %v1107 = vunpack.c.h.b16 %v365
    %v1108 = vunpack.c.l.b16 %v366
    %v1109 = vunpack.c.h.b16 %v366
    %v1110 = vunpack.c.l.b16 %v367
    %v1111 = vunpack.c.h.b16 %v367
    %v1112 = vunpack.c.l.b16 %v368
    %v1113 = vunpack.c.h.b16 %v368
    %v1114 = vunpack.c.l.b16 %v369
    %v1115 = vunpack.c.h.b16 %v369
    %v1116 = vunpack.c.l.b16 %v370
    %v1117 = vunpack.c.h.b16 %v370
    %v1118 = vunpack.c.l.b16 %v371
    %v1119 = vunpack.c.h.b16 %v371
    %v1120 = vunpack.c.l.b16 %v372
    %v1121 = vunpack.c.h.b16 %v372
    %v1122 = vunpack.c.l.b16 %v373
    %v1123 = vunpack.c.h.b16 %v373
    %v1124 = vunpack.c.l.b16 %v374
    %v1125 = vunpack.c.h.b16 %v374
    %v1126 = vunpack.c.l.b16 %v375
    %v1127 = vunpack.c.h.b16 %v375
    %v1128 = vunpack.c.l.b16 %v376
    %v1129 = vunpack.c.h.b16 %v376
    %v1130 = vunpack.c.l.b16 %v377
    %v1131 = vunpack.c.h.b16 %v377
    %v1132 = vunpack.c.l.b16 %v378
    %v1133 = vunpack.c.h.b16 %v378
    %v1134 = vunpack.c.l.b16 %v379
    %v1135 = vunpack.c.h.b16 %v379
    %v1136 = vunpack.c.l.b16 %v380
    %v1137 = vunpack.c.h.b16 %v380
    %v1138 = vunpack.c.l.b16 %v381
    %v1139 = vunpack.c.h.b16 %v381
    %v1140 = vunpack.c.l.b16 %v382
    %v1141 = vunpack.c.h.b16 %v382
    %v1142 = vunpack.c.l.b16 %v383
    %v1143 = vunpack.c.h.b16 %v383
    %v1144 = vunpack.c.l.b16 %v384
    %v1145 = vunpack.c.h.b16 %v384
    %v1146 = vunpack.c.l.b16 %v385
    %v1147 = vunpack.c.h.b16 %v385
    %v1148 = vunpack.c.l.b16 %v386
    %v1149 = vunpack.c.h.b16 %v386
    %v1150 = vunpack.c.l.b16 %v387
    %v1151 = vunpack.c.h.b16 %v387
    %v1152 = vunpack.c.l.b16 %v388
    %v1153 = vunpack.c.h.b16 %v388
    %v1154 = vunpack.c.l.b16 %v389
    %v1155 = vunpack.c.h.b16 %v389
    %v1156 = vunpack.c.l.b16 %v390
    %v1157 = vunpack.c.h.b16 %v390
    %v1158 = vunpack.c.l.b16 %v391
    %v1159 = vunpack.c.h.b16 %v391
    %v1160 = vpack.c.b16 %v652, %v648
    %v1161 = vpack.c.b16 %v653, %v649
    %v1162 = vpack.c.b16 %v654, %v650
    %v1163 = vpack.c.b16 %v655, %v651
    %v1164 = vpack.c.b16 %v660, %v656
    %v1165 = vpack.c.b16 %v661, %v657
    %v1166 = vpack.c.b16 %v662, %v658
    %v1167 = vpack.c.b16 %v663, %v659
    %v1168 = vpack.c.b16 %v668, %v664
    %v1169 = vpack.c.b16 %v669, %v665
    %v1170 = vpack.c.b16 %v670, %v666
    %v1171 = vpack.c.b16 %v671, %v667
    %v1172 = vpack.c.b16 %v676, %v672
    %v1173 = vpack.c.b16 %v677, %v673
    %v1174 = vpack.c.b16 %v678, %v674
    %v1175 = vpack.c.b16 %v679, %v675
    %v1176 = vpack.c.b16 %v684, %v680
    %v1177 = vpack.c.b16 %v685, %v681
    %v1178 = vpack.c.b16 %v686, %v682
    %v1179 = vpack.c.b16 %v687, %v683
    %v1180 = vpack.c.b16 %v692, %v688
    %v1181 = vpack.c.b16 %v693, %v689
    %v1182 = vpack.c.b16 %v694, %v690
    %v1183 = vpack.c.b16 %v695, %v691
    %v1184 = vpack.c.b16 %v700, %v696
    %v1185 = vpack.c.b16 %v701, %v697
    %v1186 = vpack.c.b16 %v702, %v698
    %v1187 = vpack.c.b16 %v703, %v699
    %v1188 = vpack.c.b16 %v708, %v704
    %v1189 = vpack.c.b16 %v709, %v705
    %v1190 = vpack.c.b16 %v710, %v706
    %v1191 = vpack.c.b16 %v711, %v707
    %v1192 = vpack.c.b16 %v716, %v712
    %v1193 = vpack.c.b16 %v717, %v713
    %v1194 = vpack.c.b16 %v718, %v714
    %v1195 = vpack.c.b16 %v719, %v715
    %v1196 = vpack.c.b16 %v724, %v720
    %v1197 = vpack.c.b16 %v725, %v721
    %v1198 = vpack.c.b16 %v726, %v722
    %v1199 = vpack.c.b16 %v727, %v723
    %v1200 = vpack.c.b16 %v732, %v728
    %v1201 = vpack.c.b16 %v733, %v729
    %v1202 = vpack.c.b16 %v734, %v730
    %v1203 = vpack.c.b16 %v735, %v731
    %v1204 = vpack.c.b16 %v740, %v736
    %v1205 = vpack.c.b16 %v741, %v737
    %v1206 = vpack.c.b16 %v742, %v738
    %v1207 = vpack.c.b16 %v743, %v739
    %v1208 = vpack.c.b16 %v748, %v744
    %v1209 = vpack.c.b16 %v749, %v745
    %v1210 = vpack.c.b16 %v750, %v746
    %v1211 = vpack.c.b16 %v751, %v747
    %v1212 = vpack.c.b16 %v756, %v752
    %v1213 = vpack.c.b16 %v757, %v753
    %v1214 = vpack.c.b16 %v758, %v754
    %v1215 = vpack.c.b16 %v759, %v755
    %v1216 = vpack.c.b16 %v764, %v760
    %v1217 = vpack.c.b16 %v765, %v761
    %v1218 = vpack.c.b16 %v766, %v762
    %v1219 = vpack.c.b16 %v767, %v763
    %v1220 = vpack.c.b16 %v772, %v768
    %v1221 = vpack.c.b16 %v773, %v769
    %v1222 = vpack.c.b16 %v774, %v770
    %v1223 = vpack.c.b16 %v775, %v771
    %v1224 = vpack.c.b16 %v780, %v776
    %v1225 = vpack.c.b16 %v781, %v777
    %v1226 = vpack.c.b16 %v782, %v778
    %v1227 = vpack.c.b16 %v783, %v779
    %v1228 = vpack.c.b16 %v788, %v784
    %v1229 = vpack.c.b16 %v789, %v785
    %v1230 = vpack.c.b16 %v790, %v786
    %v1231 = vpack.c.b16 %v791, %v787
    %v1232 = vpack.c.b16 %v796, %v792
    %v1233 = vpack.c.b16 %v797, %v793
    %v1234 = vpack.c.b16 %v798, %v794
    %v1235 = vpack.c.b16 %v799, %v795
    %v1236 = vpack.c.b16 %v804, %v800
    %v1237 = vpack.c.b16 %v805, %v801
    %v1238 = vpack.c.b16 %v806, %v802
    %v1239 = vpack.c.b16 %v807, %v803
    %v1240 = vpack.c.b16 %v812, %v808
    %v1241 = vpack.c.b16 %v813, %v809
    %v1242 = vpack.c.b16 %v814, %v810
    %v1243 = vpack.c.b16 %v815, %v811
    %v1244 = vpack.c.b16 %v820, %v816
    %v1245 = vpack.c.b16 %v821, %v817
    %v1246 = vpack.c.b16 %v822, %v818
    %v1247 = vpack.c.b16 %v823, %v819
    %v1248 = vpack.c.b16 %v828, %v824
    %v1249 = vpack.c.b16 %v829, %v825
    %v1250 = vpack.c.b16 %v830, %v826
    %v1251 = vpack.c.b16 %v831, %v827
    %v1252 = vpack.c.b16 %v836, %v832
    %v1253 = vpack.c.b16 %v837, %v833
    %v1254 = vpack.c.b16 %v838, %v834
    %v1255 = vpack.c.b16 %v839, %v835
    %v1256 = vpack.c.b16 %v844, %v840
    %v1257 = vpack.c.b16 %v845, %v841
    %v1258 = vpack.c.b16 %v846, %v842
    %v1259 = vpack.c.b16 %v847, %v843
    %v1260 = vpack.c.b16 %v852, %v848
    %v1261 = vpack.c.b16 %v853, %v849
    %v1262 = vpack.c.b16 %v854, %v850
    %v1263 = vpack.c.b16 %v855, %v851
    %v1264 = vpack.c.b16 %v860, %v856
    %v1265 = vpack.c.b16 %v861, %v857
    %v1266 = vpack.c.b16 %v862, %v858
    %v1267 = vpack.c.b16 %v863, %v859
    %v1268 = vpack.c.b16 %v868, %v864
    %v1269 = vpack.c.b16 %v869, %v865
    %v1270 = vpack.c.b16 %v870, %v866
    %v1271 = vpack.c.b16 %v871, %v867
    %v1272 = vpack.c.b16 %v876, %v872
    %v1273 = vpack.c.b16 %v877, %v873
    %v1274 = vpack.c.b16 %v878, %v874
    %v1275 = vpack.c.b16 %v879, %v875
    %v1276 = vpack.c.b16 %v884, %v880
    %v1277 = vpack.c.b16 %v885, %v881
    %v1278 = vpack.c.b16 %v886, %v882
    %v1279 = vpack.c.b16 %v887, %v883
    %v1280 = vpack.c.b16 %v892, %v888
    %v1281 = vpack.c.b16 %v893, %v889
    %v1282 = vpack.c.b16 %v894, %v890
    %v1283 = vpack.c.b16 %v895, %v891
    %v1284 = vpack.c.b16 %v900, %v896
    %v1285 = vpack.c.b16 %v901, %v897
    %v1286 = vpack.c.b16 %v902, %v898
    %v1287 = vpack.c.b16 %v903, %v899
    %v1288 = vpack.c.b16 %v908, %v904
    %v1289 = vpack.c.b16 %v909, %v905
    %v1290 = vpack.c.b16 %v910, %v906
    %v1291 = vpack.c.b16 %v911, %v907
    %v1292 = vpack.c.b16 %v916, %v912
    %v1293 = vpack.c.b16 %v917, %v913
    %v1294 = vpack.c.b16 %v918, %v914
    %v1295 = vpack.c.b16 %v919, %v915
    %v1296 = vpack.c.b16 %v924, %v920
    %v1297 = vpack.c.b16 %v925, %v921
    %v1298 = vpack.c.b16 %v926, %v922
    %v1299 = vpack.c.b16 %v927, %v923
    %v1300 = vpack.c.b16 %v932, %v928
    %v1301 = vpack.c.b16 %v933, %v929
    %v1302 = vpack.c.b16 %v934, %v930
    %v1303 = vpack.c.b16 %v935, %v931
    %v1304 = vpack.c.b16 %v940, %v936
    %v1305 = vpack.c.b16 %v941, %v937
    %v1306 = vpack.c.b16 %v942, %v938
    %v1307 = vpack.c.b16 %v943, %v939
    %v1308 = vpack.c.b16 %v948, %v944
    %v1309 = vpack.c.b16 %v949, %v945
    %v1310 = vpack.c.b16 %v950, %v946
    %v1311 = vpack.c.b16 %v951, %v947
    %v1312 = vpack.c.b16 %v956, %v952
    %v1313 = vpack.c.b16 %v957, %v953
    %v1314 = vpack.c.b16 %v958, %v954
    %v1315 = vpack.c.b16 %v959, %v955
    %v1316 = vpack.c.b16 %v964, %v960
    %v1317 = vpack.c.b16 %v965, %v961
    %v1318 = vpack.c.b16 %v966, %v962
    %v1319 = vpack.c.b16 %v967, %v963
    %v1320 = vpack.c.b16 %v972, %v968
    %v1321 = vpack.c.b16 %v973, %v969
    %v1322 = vpack.c.b16 %v974, %v970
    %v1323 = vpack.c.b16 %v975, %v971
    %v1324 = vpack.c.b16 %v980, %v976
    %v1325 = vpack.c.b16 %v981, %v977
    %v1326 = vpack.c.b16 %v982, %v978
    %v1327 = vpack.c.b16 %v983, %v979
    %v1328 = vpack.c.b16 %v988, %v984
    %v1329 = vpack.c.b16 %v989, %v985
    %v1330 = vpack.c.b16 %v990, %v986
    %v1331 = vpack.c.b16 %v991, %v987
    %v1332 = vpack.c.b16 %v996, %v992
    %v1333 = vpack.c.b16 %v997, %v993
    %v1334 = vpack.c.b16 %v998, %v994
    %v1335 = vpack.c.b16 %v999, %v995
    %v1336 = vpack.c.b16 %v1004, %v1000
    %v1337 = vpack.c.b16 %v1005, %v1001
    %v1338 = vpack.c.b16 %v1006, %v1002
    %v1339 = vpack.c.b16 %v1007, %v1003
    %v1340 = vpack.c.b16 %v1012, %v1008
    %v1341 = vpack.c.b16 %v1013, %v1009
    %v1342 = vpack.c.b16 %v1014, %v1010
    %v1343 = vpack.c.b16 %v1015, %v1011
    %v1344 = vpack.c.b16 %v1020, %v1016
    %v1345 = vpack.c.b16 %v1021, %v1017
    %v1346 = vpack.c.b16 %v1022, %v1018
    %v1347 = vpack.c.b16 %v1023, %v1019
    %v1348 = vpack.c.b16 %v1028, %v1024
    %v1349 = vpack.c.b16 %v1029, %v1025
    %v1350 = vpack.c.b16 %v1030, %v1026
    %v1351 = vpack.c.b16 %v1031, %v1027
    %v1352 = vpack.c.b16 %v1036, %v1032
    %v1353 = vpack.c.b16 %v1037, %v1033
    %v1354 = vpack.c.b16 %v1038, %v1034
    %v1355 = vpack.c.b16 %v1039, %v1035
    %v1356 = vpack.c.b16 %v1044, %v1040
    %v1357 = vpack.c.b16 %v1045, %v1041
    %v1358 = vpack.c.b16 %v1046, %v1042
    %v1359 = vpack.c.b16 %v1047, %v1043
    %v1360 = vpack.c.b16 %v1052, %v1048
    %v1361 = vpack.c.b16 %v1053, %v1049
    %v1362 = vpack.c.b16 %v1054, %v1050
    %v1363 = vpack.c.b16 %v1055, %v1051
    %v1364 = vpack.c.b16 %v1060, %v1056
    %v1365 = vpack.c.b16 %v1061, %v1057
    %v1366 = vpack.c.b16 %v1062, %v1058
    %v1367 = vpack.c.b16 %v1063, %v1059
    %v1368 = vpack.c.b16 %v1068, %v1064
    %v1369 = vpack.c.b16 %v1069, %v1065
    %v1370 = vpack.c.b16 %v1070, %v1066
    %v1371 = vpack.c.b16 %v1071, %v1067
    %v1372 = vpack.c.b16 %v1076, %v1072
    %v1373 = vpack.c.b16 %v1077, %v1073
    %v1374 = vpack.c.b16 %v1078, %v1074
    %v1375 = vpack.c.b16 %v1079, %v1075
    %v1376 = vpack.c.b16 %v1084, %v1080
    %v1377 = vpack.c.b16 %v1085, %v1081
    %v1378 = vpack.c.b16 %v1086, %v1082
    %v1379 = vpack.c.b16 %v1087, %v1083
    %v1380 = vpack.c.b16 %v1092, %v1088
    %v1381 = vpack.c.b16 %v1093, %v1089
    %v1382 = vpack.c.b16 %v1094, %v1090
    %v1383 = vpack.c.b16 %v1095, %v1091
    %v1384 = vpack.c.b16 %v1100, %v1096
    %v1385 = vpack.c.b16 %v1101, %v1097
    %v1386 = vpack.c.b16 %v1102, %v1098
    %v1387 = vpack.c.b16 %v1103, %v1099
    %v1388 = vpack.c.b16 %v1108, %v1104
    %v1389 = vpack.c.b16 %v1109, %v1105
    %v1390 = vpack.c.b16 %v1110, %v1106
    %v1391 = vpack.c.b16 %v1111, %v1107
    %v1392 = vpack.c.b16 %v1116, %v1112
    %v1393 = vpack.c.b16 %v1117, %v1113
    %v1394 = vpack.c.b16 %v1118, %v1114
    %v1395 = vpack.c.b16 %v1119, %v1115
    %v1396 = vpack.c.b16 %v1124, %v1120
    %v1397 = vpack.c.b16 %v1125, %v1121
    %v1398 = vpack.c.b16 %v1126, %v1122
    %v1399 = vpack.c.b16 %v1127, %v1123
    %v1400 = vpack.c.b16 %v1132, %v1128
    %v1401 = vpack.c.b16 %v1133, %v1129
    %v1402 = vpack.c.b16 %v1134, %v1130
    %v1403 = vpack.c.b16 %v1135, %v1131
    %v1404 = vpack.c.b16 %v1140, %v1136
    %v1405 = vpack.c.b16 %v1141, %v1137
    %v1406 = vpack.c.b16 %v1142, %v1138
    %v1407 = vpack.c.b16 %v1143, %v1139
    %v1408 = vpack.c.b16 %v1148, %v1144
    %v1409 = vpack.c.b16 %v1149, %v1145
    %v1410 = vpack.c.b16 %v1150, %v1146
    %v1411 = vpack.c.b16 %v1151, %v1147
    %v1412 = vpack.c.b16 %v1156, %v1152
    %v1413 = vpack.c.b16 %v1157, %v1153
    %v1414 = vpack.c.b16 %v1158, %v1154
    %v1415 = vpack.c.b16 %v1159, %v1155
    %1672 = vmatpush.bf16.msra.mxu0 %v1188
    %1673 = vmatpush.bf16.msra.mxu0 %v1184
    %1674 = vmatpush.bf16.msra.mxu0 %v1180
    %1675 = vmatpush.bf16.msra.mxu0 %v1176
    %1676 = vmatpush.bf16.msra.mxu0 %v1172
    %1677 = vmatpush.bf16.msra.mxu0 %v1168
    %1678 = vmatpush.bf16.msra.mxu0 %v1164
    %1679 = vmatpush.bf16.msra.mxu0 %v1160
    %1680 = vmatmul.bf16.gmra.mxu0 %v128
    %v1681 = vpop.f32.mrf.mxu0
    %v1682 = vadd.f32 0.0, %v1681
    %v1683 = vpop.f32.mrf.mxu0
    %1684 = vdwg.mxu0
    %1685 = vmatpush.bf16.msra.mxu0 %v1220
    %1686 = vmatpush.bf16.msra.mxu0 %v1216
    %1687 = vmatpush.bf16.msra.mxu0 %v1212
    %1688 = vmatpush.bf16.msra.mxu0 %v1208
    %1689 = vmatpush.bf16.msra.mxu0 %v1204
    %1690 = vmatpush.bf16.msra.mxu0 %v1200
    %1691 = vmatpush.bf16.msra.mxu0 %v1196
    %1692 = vmatpush.bf16.msra.mxu0 %v1192
    %1693 = vmatmul.bf16.gmra.mxu0 %v129
    %v1694 = vpop.f32.mrf.mxu0
    %v1695 = vadd.f32 %v1682, %v1694
    %v1696 = vpop.f32.mrf.mxu0
    %1697 = vdwg.mxu0
    %1698 = vmatpush.bf16.msra.mxu0 %v1252
    %1699 = vmatpush.bf16.msra.mxu0 %v1248
    %1700 = vmatpush.bf16.msra.mxu0 %v1244
    %1701 = vmatpush.bf16.msra.mxu0 %v1240
    %1702 = vmatpush.bf16.msra.mxu0 %v1236
    %1703 = vmatpush.bf16.msra.mxu0 %v1232
    %1704 = vmatpush.bf16.msra.mxu0 %v1228
    %1705 = vmatpush.bf16.msra.mxu0 %v1224
    %1706 = vmatmul.bf16.gmra.mxu0 %v130
    %v1707 = vpop.f32.mrf.mxu0
    %v1708 = vadd.f32 %v1695, %v1707
    %v1709 = vpop.f32.mrf.mxu0
    %1710 = vdwg.mxu0
    %1711 = vmatpush.bf16.msra.mxu0 %v1284
    %1712 = vmatpush.bf16.msra.mxu0 %v1280
    %1713 = vmatpush.bf16.msra.mxu0 %v1276
    %1714 = vmatpush.bf16.msra.mxu0 %v1272
    %1715 = vmatpush.bf16.msra.mxu0 %v1268
    %1716 = vmatpush.bf16.msra.mxu0 %v1264
    %1717 = vmatpush.bf16.msra.mxu0 %v1260
    %1718 = vmatpush.bf16.msra.mxu0 %v1256
    %1719 = vmatmul.bf16.gmra.mxu0 %v131
    %v1720 = vpop.f32.mrf.mxu0
    %v1721 = vadd.f32 %v1708, %v1720
    %v1722 = vpop.f32.mrf.mxu0
    %1723 = vdwg.mxu0
    %1724 = vmatpush.bf16.msra.mxu0 %v1316
    %1725 = vmatpush.bf16.msra.mxu0 %v1312
    %1726 = vmatpush.bf16.msra.mxu0 %v1308
    %1727 = vmatpush.bf16.msra.mxu0 %v1304
    %1728 = vmatpush.bf16.msra.mxu0 %v1300
    %1729 = vmatpush.bf16.msra.mxu0 %v1296
    %1730 = vmatpush.bf16.msra.mxu0 %v1292
    %1731 = vmatpush.bf16.msra.mxu0 %v1288
    %1732 = vmatmul.bf16.gmra.mxu0 %v132
    %v1733 = vpop.f32.mrf.mxu0
    %v1734 = vadd.f32 %v1721, %v1733
    %v1735 = vpop.f32.mrf.mxu0
    %1736 = vdwg.mxu0
    %1737 = vmatpush.bf16.msra.mxu0 %v1348
    %1738 = vmatpush.bf16.msra.mxu0 %v1344
    %1739 = vmatpush.bf16.msra.mxu0 %v1340
    %1740 = vmatpush.bf16.msra.mxu0 %v1336
    %1741 = vmatpush.bf16.msra.mxu0 %v1332
    %1742 = vmatpush.bf16.msra.mxu0 %v1328
    %1743 = vmatpush.bf16.msra.mxu0 %v1324
    %1744 = vmatpush.bf16.msra.mxu0 %v1320
    %1745 = vmatmul.bf16.gmra.mxu0 %v133
    %v1746 = vpop.f32.mrf.mxu0
    %v1747 = vadd.f32 %v1734, %v1746
    %v1748 = vpop.f32.mrf.mxu0
    %1749 = vdwg.mxu0
    %1750 = vmatpush.bf16.msra.mxu0 %v1380
    %1751 = vmatpush.bf16.msra.mxu0 %v1376
    %1752 = vmatpush.bf16.msra.mxu0 %v1372
    %1753 = vmatpush.bf16.msra.mxu0 %v1368
    %1754 = vmatpush.bf16.msra.mxu0 %v1364
    %1755 = vmatpush.bf16.msra.mxu0 %v1360
    %1756 = vmatpush.bf16.msra.mxu0 %v1356
    %1757 = vmatpush.bf16.msra.mxu0 %v1352
    %1758 = vmatmul.bf16.gmra.mxu0 %v134
    %v1759 = vpop.f32.mrf.mxu0
    %v1760 = vadd.f32 %v1747, %v1759
    %v1761 = vpop.f32.mrf.mxu0
    %1762 = vdwg.mxu0
    %1763 = vmatpush.bf16.msra.mxu0 %v1412
    %1764 = vmatpush.bf16.msra.mxu0 %v1408
    %1765 = vmatpush.bf16.msra.mxu0 %v1404
    %1766 = vmatpush.bf16.msra.mxu0 %v1400
    %1767 = vmatpush.bf16.msra.mxu0 %v1396
    %1768 = vmatpush.bf16.msra.mxu0 %v1392
    %1769 = vmatpush.bf16.msra.mxu0 %v1388
    %1770 = vmatpush.bf16.msra.mxu0 %v1384
    %1771 = vmatmul.bf16.gmra.mxu0 %v135
    %v1772 = vpop.f32.mrf.mxu0
    %v1773 = vadd.f32 %v1760, %v1772
    %v1774 = vpop.f32.mrf.mxu0
    %1775 = vdwg.mxu0
    %1776 = vmatpush.bf16.msra.mxu0 %v1189
    %1777 = vmatpush.bf16.msra.mxu0 %v1185
    %1778 = vmatpush.bf16.msra.mxu0 %v1181
    %1779 = vmatpush.bf16.msra.mxu0 %v1177
    %1780 = vmatpush.bf16.msra.mxu0 %v1173
    %1781 = vmatpush.bf16.msra.mxu0 %v1169
    %1782 = vmatpush.bf16.msra.mxu0 %v1165
    %1783 = vmatpush.bf16.msra.mxu0 %v1161
    %1784 = vmatmul.bf16.gmra.mxu0 %v128
    %v1785 = vpop.f32.mrf.mxu0
    %v1786 = vadd.f32 0.0, %v1785
    %v1787 = vpop.f32.mrf.mxu0
    %1788 = vdwg.mxu0
    %1789 = vmatpush.bf16.msra.mxu0 %v1221
    %1790 = vmatpush.bf16.msra.mxu0 %v1217
    %1791 = vmatpush.bf16.msra.mxu0 %v1213
    %1792 = vmatpush.bf16.msra.mxu0 %v1209
    %1793 = vmatpush.bf16.msra.mxu0 %v1205
    %1794 = vmatpush.bf16.msra.mxu0 %v1201
    %1795 = vmatpush.bf16.msra.mxu0 %v1197
    %1796 = vmatpush.bf16.msra.mxu0 %v1193
    %1797 = vmatmul.bf16.gmra.mxu0 %v129
    %v1798 = vpop.f32.mrf.mxu0
    %v1799 = vadd.f32 %v1786, %v1798
    %v1800 = vpop.f32.mrf.mxu0
    %1801 = vdwg.mxu0
    %1802 = vmatpush.bf16.msra.mxu0 %v1253
    %1803 = vmatpush.bf16.msra.mxu0 %v1249
    %1804 = vmatpush.bf16.msra.mxu0 %v1245
    %1805 = vmatpush.bf16.msra.mxu0 %v1241
    %1806 = vmatpush.bf16.msra.mxu0 %v1237
    %1807 = vmatpush.bf16.msra.mxu0 %v1233
    %1808 = vmatpush.bf16.msra.mxu0 %v1229
    %1809 = vmatpush.bf16.msra.mxu0 %v1225
    %1810 = vmatmul.bf16.gmra.mxu0 %v130
    %v1811 = vpop.f32.mrf.mxu0
    %v1812 = vadd.f32 %v1799, %v1811
    %v1813 = vpop.f32.mrf.mxu0
    %1814 = vdwg.mxu0
    %1815 = vmatpush.bf16.msra.mxu0 %v1285
    %1816 = vmatpush.bf16.msra.mxu0 %v1281
    %1817 = vmatpush.bf16.msra.mxu0 %v1277
    %1818 = vmatpush.bf16.msra.mxu0 %v1273
    %1819 = vmatpush.bf16.msra.mxu0 %v1269
    %1820 = vmatpush.bf16.msra.mxu0 %v1265
    %1821 = vmatpush.bf16.msra.mxu0 %v1261
    %1822 = vmatpush.bf16.msra.mxu0 %v1257
    %1823 = vmatmul.bf16.gmra.mxu0 %v131
    %v1824 = vpop.f32.mrf.mxu0
    %v1825 = vadd.f32 %v1812, %v1824
    %v1826 = vpop.f32.mrf.mxu0
    %1827 = vdwg.mxu0
    %1828 = vmatpush.bf16.msra.mxu0 %v1317
    %1829 = vmatpush.bf16.msra.mxu0 %v1313
    %1830 = vmatpush.bf16.msra.mxu0 %v1309
    %1831 = vmatpush.bf16.msra.mxu0 %v1305
    %1832 = vmatpush.bf16.msra.mxu0 %v1301
    %1833 = vmatpush.bf16.msra.mxu0 %v1297
    %1834 = vmatpush.bf16.msra.mxu0 %v1293
    %1835 = vmatpush.bf16.msra.mxu0 %v1289
    %1836 = vmatmul.bf16.gmra.mxu0 %v132
    %v1837 = vpop.f32.mrf.mxu0
    %v1838 = vadd.f32 %v1825, %v1837
    %v1839 = vpop.f32.mrf.mxu0
    %1840 = vdwg.mxu0
    %1841 = vmatpush.bf16.msra.mxu0 %v1349
    %1842 = vmatpush.bf16.msra.mxu0 %v1345
    %1843 = vmatpush.bf16.msra.mxu0 %v1341
    %1844 = vmatpush.bf16.msra.mxu0 %v1337
    %1845 = vmatpush.bf16.msra.mxu0 %v1333
    %1846 = vmatpush.bf16.msra.mxu0 %v1329
    %1847 = vmatpush.bf16.msra.mxu0 %v1325
    %1848 = vmatpush.bf16.msra.mxu0 %v1321
    %1849 = vmatmul.bf16.gmra.mxu0 %v133
    %v1850 = vpop.f32.mrf.mxu0
    %v1851 = vadd.f32 %v1838, %v1850
    %v1852 = vpop.f32.mrf.mxu0
    %1853 = vdwg.mxu0
    %1854 = vmatpush.bf16.msra.mxu0 %v1381
    %1855 = vmatpush.bf16.msra.mxu0 %v1377
    %1856 = vmatpush.bf16.msra.mxu0 %v1373
    %1857 = vmatpush.bf16.msra.mxu0 %v1369
    %1858 = vmatpush.bf16.msra.mxu0 %v1365
    %1859 = vmatpush.bf16.msra.mxu0 %v1361
    %1860 = vmatpush.bf16.msra.mxu0 %v1357
    %1861 = vmatpush.bf16.msra.mxu0 %v1353
    %1862 = vmatmul.bf16.gmra.mxu0 %v134
    %v1863 = vpop.f32.mrf.mxu0
    %v1864 = vadd.f32 %v1851, %v1863
    %v1865 = vpop.f32.mrf.mxu0
    %1866 = vdwg.mxu0
    %1867 = vmatpush.bf16.msra.mxu0 %v1413
    %1868 = vmatpush.bf16.msra.mxu0 %v1409
    %1869 = vmatpush.bf16.msra.mxu0 %v1405
    %1870 = vmatpush.bf16.msra.mxu0 %v1401
    %1871 = vmatpush.bf16.msra.mxu0 %v1397
    %1872 = vmatpush.bf16.msra.mxu0 %v1393
    %1873 = vmatpush.bf16.msra.mxu0 %v1389
    %1874 = vmatpush.bf16.msra.mxu0 %v1385
    %1875 = vmatmul.bf16.gmra.mxu0 %v135
    %v1876 = vpop.f32.mrf.mxu0
    %v1877 = vadd.f32 %v1864, %v1876
    %v1878 = vpop.f32.mrf.mxu0
    %1879 = vdwg.mxu0
    %1880 = vmatpush.bf16.msra.mxu0 %v1190
    %1881 = vmatpush.bf16.msra.mxu0 %v1186
    %1882 = vmatpush.bf16.msra.mxu0 %v1182
    %1883 = vmatpush.bf16.msra.mxu0 %v1178
    %1884 = vmatpush.bf16.msra.mxu0 %v1174
    %1885 = vmatpush.bf16.msra.mxu0 %v1170
    %1886 = vmatpush.bf16.msra.mxu0 %v1166
    %1887 = vmatpush.bf16.msra.mxu0 %v1162
    %1888 = vmatmul.bf16.gmra.mxu0 %v128
    %v1889 = vpop.f32.mrf.mxu0
    %v1890 = vadd.f32 0.0, %v1889
    %v1891 = vpop.f32.mrf.mxu0
    %1892 = vdwg.mxu0
    %1893 = vmatpush.bf16.msra.mxu0 %v1222
    %1894 = vmatpush.bf16.msra.mxu0 %v1218
    %1895 = vmatpush.bf16.msra.mxu0 %v1214
    %1896 = vmatpush.bf16.msra.mxu0 %v1210
    %1897 = vmatpush.bf16.msra.mxu0 %v1206
    %1898 = vmatpush.bf16.msra.mxu0 %v1202
    %1899 = vmatpush.bf16.msra.mxu0 %v1198
    %1900 = vmatpush.bf16.msra.mxu0 %v1194
    %1901 = vmatmul.bf16.gmra.mxu0 %v129
    %v1902 = vpop.f32.mrf.mxu0
    %v1903 = vadd.f32 %v1890, %v1902
    %v1904 = vpop.f32.mrf.mxu0
    %1905 = vdwg.mxu0
    %1906 = vmatpush.bf16.msra.mxu0 %v1254
    %1907 = vmatpush.bf16.msra.mxu0 %v1250
    %1908 = vmatpush.bf16.msra.mxu0 %v1246
    %1909 = vmatpush.bf16.msra.mxu0 %v1242
    %1910 = vmatpush.bf16.msra.mxu0 %v1238
    %1911 = vmatpush.bf16.msra.mxu0 %v1234
    %1912 = vmatpush.bf16.msra.mxu0 %v1230
    %1913 = vmatpush.bf16.msra.mxu0 %v1226
    %1914 = vmatmul.bf16.gmra.mxu0 %v130
    %v1915 = vpop.f32.mrf.mxu0
    %v1916 = vadd.f32 %v1903, %v1915
    %v1917 = vpop.f32.mrf.mxu0
    %1918 = vdwg.mxu0
    %1919 = vmatpush.bf16.msra.mxu0 %v1286
    %1920 = vmatpush.bf16.msra.mxu0 %v1282
    %1921 = vmatpush.bf16.msra.mxu0 %v1278
    %1922 = vmatpush.bf16.msra.mxu0 %v1274
    %1923 = vmatpush.bf16.msra.mxu0 %v1270
    %1924 = vmatpush.bf16.msra.mxu0 %v1266
    %1925 = vmatpush.bf16.msra.mxu0 %v1262
    %1926 = vmatpush.bf16.msra.mxu0 %v1258
    %1927 = vmatmul.bf16.gmra.mxu0 %v131
    %v1928 = vpop.f32.mrf.mxu0
    %v1929 = vadd.f32 %v1916, %v1928
    %v1930 = vpop.f32.mrf.mxu0
    %1931 = vdwg.mxu0
    %1932 = vmatpush.bf16.msra.mxu0 %v1318
    %1933 = vmatpush.bf16.msra.mxu0 %v1314
    %1934 = vmatpush.bf16.msra.mxu0 %v1310
    %1935 = vmatpush.bf16.msra.mxu0 %v1306
    %1936 = vmatpush.bf16.msra.mxu0 %v1302
    %1937 = vmatpush.bf16.msra.mxu0 %v1298
    %1938 = vmatpush.bf16.msra.mxu0 %v1294
    %1939 = vmatpush.bf16.msra.mxu0 %v1290
    %1940 = vmatmul.bf16.gmra.mxu0 %v132
    %v1941 = vpop.f32.mrf.mxu0
    %v1942 = vadd.f32 %v1929, %v1941
    %v1943 = vpop.f32.mrf.mxu0
    %1944 = vdwg.mxu0
    %1945 = vmatpush.bf16.msra.mxu0 %v1350
    %1946 = vmatpush.bf16.msra.mxu0 %v1346
    %1947 = vmatpush.bf16.msra.mxu0 %v1342
    %1948 = vmatpush.bf16.msra.mxu0 %v1338
    %1949 = vmatpush.bf16.msra.mxu0 %v1334
    %1950 = vmatpush.bf16.msra.mxu0 %v1330
    %1951 = vmatpush.bf16.msra.mxu0 %v1326
    %1952 = vmatpush.bf16.msra.mxu0 %v1322
    %1953 = vmatmul.bf16.gmra.mxu0 %v133
    %v1954 = vpop.f32.mrf.mxu0
    %v1955 = vadd.f32 %v1942, %v1954
    %v1956 = vpop.f32.mrf.mxu0
    %1957 = vdwg.mxu0
    %1958 = vmatpush.bf16.msra.mxu0 %v1382
    %1959 = vmatpush.bf16.msra.mxu0 %v1378
    %1960 = vmatpush.bf16.msra.mxu0 %v1374
    %1961 = vmatpush.bf16.msra.mxu0 %v1370
    %1962 = vmatpush.bf16.msra.mxu0 %v1366
    %1963 = vmatpush.bf16.msra.mxu0 %v1362
    %1964 = vmatpush.bf16.msra.mxu0 %v1358
    %1965 = vmatpush.bf16.msra.mxu0 %v1354
    %1966 = vmatmul.bf16.gmra.mxu0 %v134
    %v1967 = vpop.f32.mrf.mxu0
    %v1968 = vadd.f32 %v1955, %v1967
    %v1969 = vpop.f32.mrf.mxu0
    %1970 = vdwg.mxu0
    %1971 = vmatpush.bf16.msra.mxu0 %v1414
    %1972 = vmatpush.bf16.msra.mxu0 %v1410
    %1973 = vmatpush.bf16.msra.mxu0 %v1406
    %1974 = vmatpush.bf16.msra.mxu0 %v1402
    %1975 = vmatpush.bf16.msra.mxu0 %v1398
    %1976 = vmatpush.bf16.msra.mxu0 %v1394
    %1977 = vmatpush.bf16.msra.mxu0 %v1390
    %1978 = vmatpush.bf16.msra.mxu0 %v1386
    %1979 = vmatmul.bf16.gmra.mxu0 %v135
    %v1980 = vpop.f32.mrf.mxu0
    %v1981 = vadd.f32 %v1968, %v1980
    %v1982 = vpop.f32.mrf.mxu0
    %1983 = vdwg.mxu0
    %1984 = vmatpush.bf16.msra.mxu0 %v1191
    %1985 = vmatpush.bf16.msra.mxu0 %v1187
    %1986 = vmatpush.bf16.msra.mxu0 %v1183
    %1987 = vmatpush.bf16.msra.mxu0 %v1179
    %1988 = vmatpush.bf16.msra.mxu0 %v1175
    %1989 = vmatpush.bf16.msra.mxu0 %v1171
    %1990 = vmatpush.bf16.msra.mxu0 %v1167
    %1991 = vmatpush.bf16.msra.mxu0 %v1163
    %1992 = vmatmul.bf16.gmra.mxu0 %v128
    %v1993 = vpop.f32.mrf.mxu0
    %v1994 = vadd.f32 0.0, %v1993
    %v1995 = vpop.f32.mrf.mxu0
    %1996 = vdwg.mxu0
    %1997 = vmatpush.bf16.msra.mxu0 %v1223
    %1998 = vmatpush.bf16.msra.mxu0 %v1219
    %1999 = vmatpush.bf16.msra.mxu0 %v1215
    %2000 = vmatpush.bf16.msra.mxu0 %v1211
    %2001 = vmatpush.bf16.msra.mxu0 %v1207
    %2002 = vmatpush.bf16.msra.mxu0 %v1203
    %2003 = vmatpush.bf16.msra.mxu0 %v1199
    %2004 = vmatpush.bf16.msra.mxu0 %v1195
    %2005 = vmatmul.bf16.gmra.mxu0 %v129
    %v2006 = vpop.f32.mrf.mxu0
    %v2007 = vadd.f32 %v1994, %v2006
    %v2008 = vpop.f32.mrf.mxu0
    %2009 = vdwg.mxu0
    %2010 = vmatpush.bf16.msra.mxu0 %v1255
    %2011 = vmatpush.bf16.msra.mxu0 %v1251
    %2012 = vmatpush.bf16.msra.mxu0 %v1247
    %2013 = vmatpush.bf16.msra.mxu0 %v1243
    %2014 = vmatpush.bf16.msra.mxu0 %v1239
    %2015 = vmatpush.bf16.msra.mxu0 %v1235
    %2016 = vmatpush.bf16.msra.mxu0 %v1231
    %2017 = vmatpush.bf16.msra.mxu0 %v1227
    %2018 = vmatmul.bf16.gmra.mxu0 %v130
    %v2019 = vpop.f32.mrf.mxu0
    %v2020 = vadd.f32 %v2007, %v2019
    %v2021 = vpop.f32.mrf.mxu0
    %2022 = vdwg.mxu0
    %2023 = vmatpush.bf16.msra.mxu0 %v1287
    %2024 = vmatpush.bf16.msra.mxu0 %v1283
    %2025 = vmatpush.bf16.msra.mxu0 %v1279
    %2026 = vmatpush.bf16.msra.mxu0 %v1275
    %2027 = vmatpush.bf16.msra.mxu0 %v1271
    %2028 = vmatpush.bf16.msra.mxu0 %v1267
    %2029 = vmatpush.bf16.msra.mxu0 %v1263
    %2030 = vmatpush.bf16.msra.mxu0 %v1259
    %2031 = vmatmul.bf16.gmra.mxu0 %v131
    %v2032 = vpop.f32.mrf.mxu0
    %v2033 = vadd.f32 %v2020, %v2032
    %v2034 = vpop.f32.mrf.mxu0
    %2035 = vdwg.mxu0
    %2036 = vmatpush.bf16.msra.mxu0 %v1319
    %2037 = vmatpush.bf16.msra.mxu0 %v1315
    %2038 = vmatpush.bf16.msra.mxu0 %v1311
    %2039 = vmatpush.bf16.msra.mxu0 %v1307
    %2040 = vmatpush.bf16.msra.mxu0 %v1303
    %2041 = vmatpush.bf16.msra.mxu0 %v1299
    %2042 = vmatpush.bf16.msra.mxu0 %v1295
    %2043 = vmatpush.bf16.msra.mxu0 %v1291
    %2044 = vmatmul.bf16.gmra.mxu0 %v132
    %v2045 = vpop.f32.mrf.mxu0
    %v2046 = vadd.f32 %v2033, %v2045
    %v2047 = vpop.f32.mrf.mxu0
    %2048 = vdwg.mxu0
    %2049 = vmatpush.bf16.msra.mxu0 %v1351
    %2050 = vmatpush.bf16.msra.mxu0 %v1347
    %2051 = vmatpush.bf16.msra.mxu0 %v1343
    %2052 = vmatpush.bf16.msra.mxu0 %v1339
    %2053 = vmatpush.bf16.msra.mxu0 %v1335
    %2054 = vmatpush.bf16.msra.mxu0 %v1331
    %2055 = vmatpush.bf16.msra.mxu0 %v1327
    %2056 = vmatpush.bf16.msra.mxu0 %v1323
    %2057 = vmatmul.bf16.gmra.mxu0 %v133
    %v2058 = vpop.f32.mrf.mxu0
    %v2059 = vadd.f32 %v2046, %v2058
    %v2060 = vpop.f32.mrf.mxu0
    %2061 = vdwg.mxu0
    %2062 = vmatpush.bf16.msra.mxu0 %v1383
    %2063 = vmatpush.bf16.msra.mxu0 %v1379
    %2064 = vmatpush.bf16.msra.mxu0 %v1375
    %2065 = vmatpush.bf16.msra.mxu0 %v1371
    %2066 = vmatpush.bf16.msra.mxu0 %v1367
    %2067 = vmatpush.bf16.msra.mxu0 %v1363
    %2068 = vmatpush.bf16.msra.mxu0 %v1359
    %2069 = vmatpush.bf16.msra.mxu0 %v1355
    %2070 = vmatmul.bf16.gmra.mxu0 %v134
    %v2071 = vpop.f32.mrf.mxu0
    %v2072 = vadd.f32 %v2059, %v2071
    %v2073 = vpop.f32.mrf.mxu0
    %2074 = vdwg.mxu0
    %2075 = vmatpush.bf16.msra.mxu0 %v1415
    %2076 = vmatpush.bf16.msra.mxu0 %v1411
    %2077 = vmatpush.bf16.msra.mxu0 %v1407
    %2078 = vmatpush.bf16.msra.mxu0 %v1403
    %2079 = vmatpush.bf16.msra.mxu0 %v1399
    %2080 = vmatpush.bf16.msra.mxu0 %v1395
    %2081 = vmatpush.bf16.msra.mxu0 %v1391
    %2082 = vmatpush.bf16.msra.mxu0 %v1387
    %2083 = vmatmul.bf16.gmra.mxu0 %v135
    %v2084 = vpop.f32.mrf.mxu0
    %v2085 = vadd.f32 %v2072, %v2084
    %v2086 = vpop.f32.mrf.mxu0
    %2087 = vdwg.mxu0
    %v2088 = vadd.f32 %v116, %v1773
    %v2089 = vadd.f32 %v117, %v1877
    %v2090 = vadd.f32 %v118, %v1981
    %v2091 = vadd.f32 %v119, %v2085
    %2092 = vst [vmem:[#allocation2] sm:$0xff] %v2088
    %2093 = vst [vmem:[#allocation2 + $0x8] sm:$0xff] %v2089
    %2094 = vst [vmem:[#allocation2 + $0x10] sm:$0xff] %v2090
    %2095 = vst [vmem:[#allocation2 + $0x18] sm:$0xff] %v2091
    // Predicated region
    $region62: #{tpu_custom_call.1} parent=1 // pred_check
      %p2096 = pneg %p108
    $region63: #{tpu_custom_call.1} parent=1 // pred_check_branch
      %2098 = sbr.rel (%p2096) target = $region65
    $region64: #{tpu_custom_call.1} parent=1 // pred_region
      %v2099 = vld [vmem:[#allocation2] sm:$0xff]
      %v2100 = vld [vmem:[#allocation2 + $0x8] sm:$0xff]
      %v2101 = vld [vmem:[#allocation2 + $0x10] sm:$0xff]
      %v2102 = vld [vmem:[#allocation2 + $0x18] sm:$0xff]
      %v2103 = vld [vmem:[#allocation8] sm:$0xf]
      %v2105 = vperm.slane %v2103, 0
      %v2106 = vperm.slane %v2103, 1
      %v2107 = vperm.slane %v2103, 2
      %v2108 = vperm.slane %v2103, 3
      %v2113 = vadd.f32 %v2099, %v2105
      %v2114 = vadd.f32 %v2100, %v2106
      %v2115 = vadd.f32 %v2101, %v2107
      %v2116 = vadd.f32 %v2102, %v2108
      %v2117 = vmax.f32 %v2113, 0.0
      %v2118 = vmax.f32 %v2114, 0.0
      %v2119 = vmax.f32 %v2115, 0.0
      %v2120 = vmax.f32 %v2116, 0.0
      %v2121 = vpack.c.bf16 %v2117, %v2117
      %v2122 = vpack.c.bf16 %v2118, %v2118
      %v2123 = vpack.c.bf16 %v2119, %v2119
      %v2124 = vpack.c.bf16 %v2120, %v2120
      %v2125 = vld [vmem:[#allocation9] sm:$0xf]
      %v2126 = vld [vmem:[#allocation9 + $0x4] sm:$0xf]
      %v2127 = vld [vmem:[#allocation9 + $0x8] sm:$0xf]
      %v2128 = vld [vmem:[#allocation9 + $0xc] sm:$0xf]
      %v2129 = vld [vmem:[#allocation9 + $0x10] sm:$0xf]
      %v2130 = vld [vmem:[#allocation9 + $0x14] sm:$0xf]
      %v2131 = vld [vmem:[#allocation9 + $0x18] sm:$0xf]
      %v2132 = vld [vmem:[#allocation9 + $0x1c] sm:$0xf]
      %v2133 = vld [vmem:[#allocation9 + $0x20] sm:$0xf]
      %v2134 = vld [vmem:[#allocation9 + $0x24] sm:$0xf]
      %v2135 = vld [vmem:[#allocation9 + $0x28] sm:$0xf]
      %v2136 = vld [vmem:[#allocation9 + $0x2c] sm:$0xf]
      %v2137 = vld [vmem:[#allocation9 + $0x30] sm:$0xf]
      %v2138 = vld [vmem:[#allocation9 + $0x34] sm:$0xf]
      %v2139 = vld [vmem:[#allocation9 + $0x38] sm:$0xf]
      %v2140 = vld [vmem:[#allocation9 + $0x3c] sm:$0xf]
      %v2141 = vld [vmem:[#allocation9 + $0x40] sm:$0xf]
      %v2142 = vld [vmem:[#allocation9 + $0x44] sm:$0xf]
      %v2143 = vld [vmem:[#allocation9 + $0x48] sm:$0xf]
      %v2144 = vld [vmem:[#allocation9 + $0x4c] sm:$0xf]
      %v2145 = vld [vmem:[#allocation9 + $0x50] sm:$0xf]
      %v2146 = vld [vmem:[#allocation9 + $0x54] sm:$0xf]
      %v2147 = vld [vmem:[#allocation9 + $0x58] sm:$0xf]
      %v2148 = vld [vmem:[#allocation9 + $0x5c] sm:$0xf]
      %v2149 = vld [vmem:[#allocation9 + $0x60] sm:$0xf]
      %v2150 = vld [vmem:[#allocation9 + $0x64] sm:$0xf]
      %v2151 = vld [vmem:[#allocation9 + $0x68] sm:$0xf]
      %v2152 = vld [vmem:[#allocation9 + $0x6c] sm:$0xf]
      %v2153 = vld [vmem:[#allocation9 + $0x70] sm:$0xf]
      %v2154 = vld [vmem:[#allocation9 + $0x74] sm:$0xf]
      %v2155 = vld [vmem:[#allocation9 + $0x78] sm:$0xf]
      %v2156 = vld [vmem:[#allocation9 + $0x7c] sm:$0xf]
      %v2157 = vld [vmem:[#allocation9 + $0x80] sm:$0xf]
      %v2158 = vld [vmem:[#allocation9 + $0x84] sm:$0xf]
      %v2159 = vld [vmem:[#allocation9 + $0x88] sm:$0xf]
      %v2160 = vld [vmem:[#allocation9 + $0x8c] sm:$0xf]
      %v2161 = vld [vmem:[#allocation9 + $0x90] sm:$0xf]
      %v2162 = vld [vmem:[#allocation9 + $0x94] sm:$0xf]
      %v2163 = vld [vmem:[#allocation9 + $0x98] sm:$0xf]
      %v2164 = vld [vmem:[#allocation9 + $0x9c] sm:$0xf]
      %v2165 = vld [vmem:[#allocation9 + $0xa0] sm:$0xf]
      %v2166 = vld [vmem:[#allocation9 + $0xa4] sm:$0xf]
      %v2167 = vld [vmem:[#allocation9 + $0xa8] sm:$0xf]
      %v2168 = vld [vmem:[#allocation9 + $0xac] sm:$0xf]
      %v2169 = vld [vmem:[#allocation9 + $0xb0] sm:$0xf]
      %v2170 = vld [vmem:[#allocation9 + $0xb4] sm:$0xf]
      %v2171 = vld [vmem:[#allocation9 + $0xb8] sm:$0xf]
      %v2172 = vld [vmem:[#allocation9 + $0xbc] sm:$0xf]
      %v2173 = vld [vmem:[#allocation9 + $0xc0] sm:$0xf]
      %v2174 = vld [vmem:[#allocation9 + $0xc4] sm:$0xf]
      %v2175 = vld [vmem:[#allocation9 + $0xc8] sm:$0xf]
      %v2176 = vld [vmem:[#allocation9 + $0xcc] sm:$0xf]
      %v2177 = vld [vmem:[#allocation9 + $0xd0] sm:$0xf]
      %v2178 = vld [vmem:[#allocation9 + $0xd4] sm:$0xf]
      %v2179 = vld [vmem:[#allocation9 + $0xd8] sm:$0xf]
      %v2180 = vld [vmem:[#allocation9 + $0xdc] sm:$0xf]
      %v2181 = vld [vmem:[#allocation9 + $0xe0] sm:$0xf]
      %v2182 = vld [vmem:[#allocation9 + $0xe4] sm:$0xf]
      %v2183 = vld [vmem:[#allocation9 + $0xe8] sm:$0xf]
      %v2184 = vld [vmem:[#allocation9 + $0xec] sm:$0xf]
      %v2185 = vld [vmem:[#allocation9 + $0xf0] sm:$0xf]
      %v2186 = vld [vmem:[#allocation9 + $0xf4] sm:$0xf]
      %v2187 = vld [vmem:[#allocation9 + $0xf8] sm:$0xf]
      %v2188 = vld [vmem:[#allocation9 + $0xfc] sm:$0xf]
      %v2189 = vld [vmem:[%s4] sm:$0x1]
      %v2191 = vperm.slane %v2189, 0
      %v2257 = vunpack.c.l.b16 %v2125
      %v2258 = vunpack.c.l.b16 %v2126
      %v2259 = vunpack.c.l.b16 %v2127
      %v2260 = vunpack.c.l.b16 %v2128
      %v2261 = vunpack.c.l.b16 %v2129
      %v2262 = vunpack.c.l.b16 %v2130
      %v2263 = vunpack.c.l.b16 %v2131
      %v2264 = vunpack.c.l.b16 %v2132
      %v2265 = vunpack.c.l.b16 %v2133
      %v2266 = vunpack.c.l.b16 %v2134
      %v2267 = vunpack.c.l.b16 %v2135
      %v2268 = vunpack.c.l.b16 %v2136
      %v2269 = vunpack.c.l.b16 %v2137
      %v2270 = vunpack.c.l.b16 %v2138
      %v2271 = vunpack.c.l.b16 %v2139
      %v2272 = vunpack.c.l.b16 %v2140
      %v2273 = vunpack.c.l.b16 %v2141
      %v2274 = vunpack.c.l.b16 %v2142
      %v2275 = vunpack.c.l.b16 %v2143
      %v2276 = vunpack.c.l.b16 %v2144
      %v2277 = vunpack.c.l.b16 %v2145
      %v2278 = vunpack.c.l.b16 %v2146
      %v2279 = vunpack.c.l.b16 %v2147
      %v2280 = vunpack.c.l.b16 %v2148
      %v2281 = vunpack.c.l.b16 %v2149
      %v2282 = vunpack.c.l.b16 %v2150
      %v2283 = vunpack.c.l.b16 %v2151
      %v2284 = vunpack.c.l.b16 %v2152
      %v2285 = vunpack.c.l.b16 %v2153
      %v2286 = vunpack.c.l.b16 %v2154
      %v2287 = vunpack.c.l.b16 %v2155
      %v2288 = vunpack.c.l.b16 %v2156
      %v2289 = vunpack.c.l.b16 %v2157
      %v2290 = vunpack.c.l.b16 %v2158
      %v2291 = vunpack.c.l.b16 %v2159
      %v2292 = vunpack.c.l.b16 %v2160
      %v2293 = vunpack.c.l.b16 %v2161
      %v2294 = vunpack.c.l.b16 %v2162
      %v2295 = vunpack.c.l.b16 %v2163
      %v2296 = vunpack.c.l.b16 %v2164
      %v2297 = vunpack.c.l.b16 %v2165
      %v2298 = vunpack.c.l.b16 %v2166
      %v2299 = vunpack.c.l.b16 %v2167
      %v2300 = vunpack.c.l.b16 %v2168
      %v2301 = vunpack.c.l.b16 %v2169
      %v2302 = vunpack.c.l.b16 %v2170
      %v2303 = vunpack.c.l.b16 %v2171
      %v2304 = vunpack.c.l.b16 %v2172
      %v2305 = vunpack.c.l.b16 %v2173
      %v2306 = vunpack.c.l.b16 %v2174
      %v2307 = vunpack.c.l.b16 %v2175
      %v2308 = vunpack.c.l.b16 %v2176
      %v2309 = vunpack.c.l.b16 %v2177
      %v2310 = vunpack.c.l.b16 %v2178
      %v2311 = vunpack.c.l.b16 %v2179
      %v2312 = vunpack.c.l.b16 %v2180
      %v2313 = vunpack.c.l.b16 %v2181
      %v2314 = vunpack.c.l.b16 %v2182
      %v2315 = vunpack.c.l.b16 %v2183
      %v2316 = vunpack.c.l.b16 %v2184
      %v2317 = vunpack.c.l.b16 %v2185
      %v2318 = vunpack.c.l.b16 %v2186
      %v2319 = vunpack.c.l.b16 %v2187
      %v2320 = vunpack.c.l.b16 %v2188
      %v2321 = vpack.c.b16 %v2258, %v2257
      %v2322 = vpack.c.b16 %v2260, %v2259
      %v2323 = vpack.c.b16 %v2262, %v2261
      %v2324 = vpack.c.b16 %v2264, %v2263
      %v2325 = vpack.c.b16 %v2266, %v2265
      %v2326 = vpack.c.b16 %v2268, %v2267
      %v2327 = vpack.c.b16 %v2270, %v2269
      %v2328 = vpack.c.b16 %v2272, %v2271
      %v2329 = vpack.c.b16 %v2274, %v2273
      %v2330 = vpack.c.b16 %v2276, %v2275
      %v2331 = vpack.c.b16 %v2278, %v2277
      %v2332 = vpack.c.b16 %v2280, %v2279
      %v2333 = vpack.c.b16 %v2282, %v2281
      %v2334 = vpack.c.b16 %v2284, %v2283
      %v2335 = vpack.c.b16 %v2286, %v2285
      %v2336 = vpack.c.b16 %v2288, %v2287
      %v2337 = vpack.c.b16 %v2290, %v2289
      %v2338 = vpack.c.b16 %v2292, %v2291
      %v2339 = vpack.c.b16 %v2294, %v2293
      %v2340 = vpack.c.b16 %v2296, %v2295
      %v2341 = vpack.c.b16 %v2298, %v2297
      %v2342 = vpack.c.b16 %v2300, %v2299
      %v2343 = vpack.c.b16 %v2302, %v2301
      %v2344 = vpack.c.b16 %v2304, %v2303
      %v2345 = vpack.c.b16 %v2306, %v2305
      %v2346 = vpack.c.b16 %v2308, %v2307
      %v2347 = vpack.c.b16 %v2310, %v2309
      %v2348 = vpack.c.b16 %v2312, %v2311
      %v2349 = vpack.c.b16 %v2314, %v2313
      %v2350 = vpack.c.b16 %v2316, %v2315
      %v2351 = vpack.c.b16 %v2318, %v2317
      %v2352 = vpack.c.b16 %v2320, %v2319
      %2385 = vmatpush.bf16.msra.mxu0 %v2328
      %2386 = vmatpush.bf16.msra.mxu0 %v2327
      %2387 = vmatpush.bf16.msra.mxu0 %v2326
      %2388 = vmatpush.bf16.msra.mxu0 %v2325
      %2389 = vmatpush.bf16.msra.mxu0 %v2324
      %2390 = vmatpush.bf16.msra.mxu0 %v2323
      %2391 = vmatpush.bf16.msra.mxu0 %v2322
      %2392 = vmatpush.bf16.msra.mxu0 %v2321
      %2393 = vmatmul.bf16.gmra.mxu0 %v2121
      %v2394 = vpop.f32.mrf.mxu0
      %v2395 = vadd.f32 %v2191, %v2394
      %v2396 = vpop.f32.mrf.mxu0
      %2397 = vdwg.mxu0
      %2398 = vmatpush.bf16.msra.mxu0 %v2336
      %2399 = vmatpush.bf16.msra.mxu0 %v2335
      %2400 = vmatpush.bf16.msra.mxu0 %v2334
      %2401 = vmatpush.bf16.msra.mxu0 %v2333
      %2402 = vmatpush.bf16.msra.mxu0 %v2332
      %2403 = vmatpush.bf16.msra.mxu0 %v2331
      %2404 = vmatpush.bf16.msra.mxu0 %v2330
      %2405 = vmatpush.bf16.msra.mxu0 %v2329
      %2406 = vmatmul.bf16.gmra.mxu0 %v2122
      %v2407 = vpop.f32.mrf.mxu0
      %v2408 = vadd.f32 %v2395, %v2407
      %v2409 = vpop.f32.mrf.mxu0
      %2410 = vdwg.mxu0
      %2411 = vmatpush.bf16.msra.mxu0 %v2344
      %2412 = vmatpush.bf16.msra.mxu0 %v2343
      %2413 = vmatpush.bf16.msra.mxu0 %v2342
      %2414 = vmatpush.bf16.msra.mxu0 %v2341
      %2415 = vmatpush.bf16.msra.mxu0 %v2340
      %2416 = vmatpush.bf16.msra.mxu0 %v2339
      %2417 = vmatpush.bf16.msra.mxu0 %v2338
      %2418 = vmatpush.bf16.msra.mxu0 %v2337
      %2419 = vmatmul.bf16.gmra.mxu0 %v2123
      %v2420 = vpop.f32.mrf.mxu0
      %v2421 = vadd.f32 %v2408, %v2420
      %v2422 = vpop.f32.mrf.mxu0
      %2423 = vdwg.mxu0
      %2424 = vmatpush.bf16.msra.mxu0 %v2352
      %2425 = vmatpush.bf16.msra.mxu0 %v2351
      %2426 = vmatpush.bf16.msra.mxu0 %v2350
      %2427 = vmatpush.bf16.msra.mxu0 %v2349
      %2428 = vmatpush.bf16.msra.mxu0 %v2348
      %2429 = vmatpush.bf16.msra.mxu0 %v2347
      %2430 = vmatpush.bf16.msra.mxu0 %v2346
      %2431 = vmatpush.bf16.msra.mxu0 %v2345
      %2432 = vmatmul.bf16.gmra.mxu0 %v2124
      %v2433 = vpop.f32.mrf.mxu0
      %v2434 = vadd.f32 %v2421, %v2433
      %v2435 = vpop.f32.mrf.mxu0
      %2436 = vdwg.mxu0
      %v2437 = vmax.f32 %v2434, 0.0
      %v2438 = vpack.c.bf16 %v2437, %v2437
      %v2439 = vld [vmem:[#allocation11] sm:$0xf]
      %v2440 = vld [vmem:[#allocation11 + $0x4] sm:$0xf]
      %v2441 = vld [vmem:[#allocation11 + $0x8] sm:$0xf]
      %v2442 = vld [vmem:[#allocation11 + $0xc] sm:$0xf]
      %v2443 = vld [vmem:[#allocation11 + $0x10] sm:$0xf]
      %v2444 = vld [vmem:[#allocation11 + $0x14] sm:$0xf]
      %v2445 = vld [vmem:[#allocation11 + $0x18] sm:$0xf]
      %v2446 = vld [vmem:[#allocation11 + $0x1c] sm:$0xf]
      %v2447 = vld [vmem:[#allocation11 + $0x20] sm:$0xf]
      %v2448 = vld [vmem:[#allocation11 + $0x24] sm:$0xf]
      %v2449 = vld [vmem:[#allocation11 + $0x28] sm:$0xf]
      %v2450 = vld [vmem:[#allocation11 + $0x2c] sm:$0xf]
      %v2451 = vld [vmem:[#allocation11 + $0x30] sm:$0xf]
      %v2452 = vld [vmem:[#allocation11 + $0x34] sm:$0xf]
      %v2453 = vld [vmem:[#allocation11 + $0x38] sm:$0xf]
      %v2454 = vld [vmem:[#allocation11 + $0x3c] sm:$0xf]
      %v2455 = vld [vmem:[%s6] sm:$0x1]
      %v2457 = vperm.slane %v2455, 0
      %v2475 = vunpack.c.l.b16 %v2439
      %v2476 = vunpack.c.l.b16 %v2440
      %v2477 = vunpack.c.l.b16 %v2441
      %v2478 = vunpack.c.l.b16 %v2442
      %v2479 = vunpack.c.l.b16 %v2443
      %v2480 = vunpack.c.l.b16 %v2444
      %v2481 = vunpack.c.l.b16 %v2445
      %v2482 = vunpack.c.l.b16 %v2446
      %v2483 = vunpack.c.l.b16 %v2447
      %v2484 = vunpack.c.l.b16 %v2448
      %v2485 = vunpack.c.l.b16 %v2449
      %v2486 = vunpack.c.l.b16 %v2450
      %v2487 = vunpack.c.l.b16 %v2451
      %v2488 = vunpack.c.l.b16 %v2452
      %v2489 = vunpack.c.l.b16 %v2453
      %v2490 = vunpack.c.l.b16 %v2454
      %v2491 = vpack.c.b16 %v2476, %v2475
      %v2492 = vpack.c.b16 %v2478, %v2477
      %v2493 = vpack.c.b16 %v2480, %v2479
      %v2494 = vpack.c.b16 %v2482, %v2481
      %v2495 = vpack.c.b16 %v2484, %v2483
      %v2496 = vpack.c.b16 %v2486, %v2485
      %v2497 = vpack.c.b16 %v2488, %v2487
      %v2498 = vpack.c.b16 %v2490, %v2489
      %2507 = vmatpush.bf16.msra.mxu0 %v2498
      %2508 = vmatpush.bf16.msra.mxu0 %v2497
      %2509 = vmatpush.bf16.msra.mxu0 %v2496
      %2510 = vmatpush.bf16.msra.mxu0 %v2495
      %2511 = vmatpush.bf16.msra.mxu0 %v2494
      %2512 = vmatpush.bf16.msra.mxu0 %v2493
      %2513 = vmatpush.bf16.msra.mxu0 %v2492
      %2514 = vmatpush.bf16.msra.mxu0 %v2491
      %2515 = vmatmul.bf16.gmra.mxu0 %v2438
      %v2516 = vpop.f32.mrf.mxu0
      %v2517 = vadd.f32 %v2457, %v2516
      %v2518 = vpop.f32.mrf.mxu0
      %2519 = vdwg.mxu0
      %v2520 = vmax.f32 %v2517, 0.0
      %v2521 = vld [vmem:[%s7] sm:$0x1]
      %v2523 = vperm.slane %v2521, 0
      %v2525 = vmul.f32 %v2520, %v2523
      %2526 = vadd.xlane.f32.xlu0 %v2525
      %v2527 = vpop.xlane.xlu0 %2526
      %v2528 = vld [vmem:[#allocation3] sm:$0x1]
      %v2530 = vperm.slane %v2528, 0
      %v2532 = vadd.f32 %v2527, %v2530
      %v2533 = vsub.f32 0.0, %v2532
      %v2534 = vmul.f32 %v2533, 1.442695
      %v2535 = vpow.pop %v2534
      %v2536 = vadd.f32 %v2535, 1.0
      %v2537 = vrcp.pop %v2536
      %vm2538 = vcmask 7168
      %2539 = vst.msk [vmem:[%s9] sm:$0xff] %vm2538, %v2537
    $region65: #{tpu_custom_call.1} parent=1 // pred_fallthru
      _
    // Predicated region
    $region66: #{tpu_custom_call.1} parent=1 // pred_check
      _
    $region67: #{tpu_custom_call.1} parent=1 // pred_check_branch
      %2541 = sbr.rel (0) target = $region69
    $region68: #{tpu_custom_call.1} parent=1 // pred_region
      _
    $region69: #{tpu_custom_call.1} parent=1 // pred_fallthru
      _
    // Predicated region
    $region70: #{tpu_custom_call.1} parent=1 // pred_check
      _
    $region71: #{tpu_custom_call.1} parent=1 // pred_check_branch
      %2543 = sbr.rel (0) target = $region73
    $region72: #{tpu_custom_call.1} parent=1 // pred_region
      _
    $region73: #{tpu_custom_call.1} parent=1 // pred_fallthru
      _
    %2544 = vsyncpa [#allocation5], 1
    %2545 = vsyncpa [#allocation7], 1
    %2546 = vsyncpa [#allocation10], 1

</llo_original>
